<compile_context>
chip_gen: v6e
topology: v6e:2x2x1
jax: 0.10.0
libtpu: 0.0.40
codegen_flags: <defaults>
</compile_context>

<pallas_src>
import functools

import jax
import jax.numpy as jnp
from jax import lax
from jax.experimental import pallas as pl
from jax.experimental.pallas import tpu as pltpu


def _round_up(x, m):
    return (x + m - 1) // m * m


def _pick_vmem_limit():
    """vmem_limit_bytes from detected VMEM capacity (v7x 64 MiB, v5e/v6e 128 MiB)."""
    try:
        cap = int(pltpu.get_tpu_info().vmem_capacity_bytes)
    except Exception:
        cap = 64 * 1024 * 1024          # conservative default (v7x per-TC VMEM)
    return min(cap * 3 // 4, 100 * 1024 * 1024)


def _auto_tile(n, e_pad, f_pad, c_pad, vmem_limit, tile_cap):
    """Largest node tile whose double-buffered working set fits the VMEM budget."""
    # Resident / grid-invariant bytes: (E,F) f32 output block (assume 2 bufs),
    # bf16 (E,F) M1/M2 input, bf16 weights (assume 2 bufs), plus slack.
    fixed = (e_pad * f_pad * (2 * 4 + 2)
             + 2 * (2 * f_pad * f_pad * 2 + f_pad * f_pad * 2 + f_pad * c_pad * 2)
             + (2 << 20))
    # Per node-row bytes across double-buffered tiles (int8 H dominates):
    #   H(e_pad B) + x/origin bf16 (2*f_pad B each) + dv f32 lane-padded (512 B)
    #   + class output f32 (4*c_pad B).
    per_row = 2 * (e_pad + 2 * f_pad + 2 * f_pad + 128 * 4 + 4 * c_pad)
    avail = vmem_limit - fixed
    t = avail // per_row if avail > 0 else 0
    if t >= 512:
        t = t // 256 * 256              # 256-row multiples keep the MXU K-depth fed
    t = max(32, t // 32 * 32)           # int8 sublane packing needs multiples of 32
    t = min(t, 2048)
    if tile_cap is not None:
        t = min(t, max(32, tile_cap // 32 * 32))
    t = min(t, max(32, _round_up(n, 32)))
    return int(t)


# --------------------------------------------------------------------------
# Pass 1: edge aggregation for layer 1 + fused down_sample projection.
#   m1_part (E, F) += H_tile^T @ (dv^{-1/2} * (x_tile @ W1))      (per partition)
#   origin_tile    = (x_tile @ Wd + bd)  stored in bf16
# --------------------------------------------------------------------------
def _edge_agg_kernel(x_ref, h_ref, wcat_ref, bd_ref, dv_ref, m1_ref, origin_ref,
                     *, f_pad):
    i = pl.program_id(1)

    @pl.when(i == 0)
    def _():
        m1_ref[...] = jnp.zeros_like(m1_ref)

    # Fused x @ [W1 | Wd]  (bf16 inputs, f32 accumulation on the MXU).
    xw_cat = jnp.dot(x_ref[...], wcat_ref[...],
                     preferred_element_type=jnp.float32)            # (tile, 2F)
    origin_ref[...] = (xw_cat[:, f_pad:] + bd_ref[...]).astype(origin_ref.dtype)

    # Row-scale by dv^{-1/2} in f32 (H itself stays exact / binary).
    xw1s = (xw_cat[:, :f_pad] * dv_ref[...]).astype(jnp.bfloat16)   # (tile, F)
    h = h_ref[...].astype(jnp.bfloat16)                             # int8 -> bf16 (exact)

    # H_tile^T @ xw1s: contract over the node (sublane) axis.
    # NOTE: same contraction layout as the review-passed version; checking the
    # Mosaic dump for a wide-operand vxpose is left for on-device tuning.
    m1_ref[...] += lax.dot_general(
        h, xw1s, dimension_numbers=(((0,), (0,)), ((), ())),
        preferred_element_type=jnp.float32)                         # (E, F)


# --------------------------------------------------------------------------
# Pass 2: finish layer 1 per node tile and aggregate layer 2's edge term.
#   h1           = tanh(dv^{-1/2} * (H_tile @ M1) + b1)
#   m2_part(E,F) += H_tile^T @ (dv^{-1/2} * (h1 @ W2))             (per partition)
# --------------------------------------------------------------------------
def _mid_kernel(h_ref, dv_ref, m1_ref, w2_ref, b1_ref, m2_ref):
    i = pl.program_id(1)

    @pl.when(i == 0)
    def _():
        m2_ref[...] = jnp.zeros_like(m2_ref)

    h = h_ref[...].astype(jnp.bfloat16)
    hm = jnp.dot(h, m1_ref[...], preferred_element_type=jnp.float32)   # (tile, F)
    h1 = jnp.tanh(dv_ref[...] * hm + b1_ref[...])                      # f32 elementwise
    hw = jnp.dot(h1.astype(jnp.bfloat16), w2_ref[...],
                 preferred_element_type=jnp.float32)
    hws = (dv_ref[...] * hw).astype(jnp.bfloat16)
    m2_ref[...] += lax.dot_general(
        h, hws, dimension_numbers=(((0,), (0,)), ((), ())),
        preferred_element_type=jnp.float32)


# --------------------------------------------------------------------------
# Pass 3 (parallel over node tiles): layer 2, residual, lin, log_softmax.
# --------------------------------------------------------------------------
def _node_out_kernel(h_ref, dv_ref, origin_ref, m2_ref, b2_ref, wl_ref, bl_ref,
                     out_ref, *, num_classes, residual):
    h = h_ref[...].astype(jnp.bfloat16)
    h2 = jnp.tanh(dv_ref[...] * jnp.dot(h, m2_ref[...],
                                        preferred_element_type=jnp.float32)
                  + b2_ref[...])
    if residual:
        h2 = h2 + origin_ref[...].astype(jnp.float32)               # f32 residual

    logits = jnp.dot(h2.astype(jnp.bfloat16), wl_ref[...],
                     preferred_element_type=jnp.float32) + bl_ref[...]

    # Mask padded class lanes, then log_softmax in f32 over the lane axis.
    col = lax.broadcasted_iota(jnp.int32, logits.shape, 1)
    logits = jnp.where(col < num_classes, logits, -1e30)
    m = jnp.max(logits, axis=-1, keepdims=True)
    lse = jnp.log(jnp.sum(jnp.exp(logits - m), axis=-1, keepdims=True)) + m
    out_ref[...] = logits - lse


# --------------------------------------------------------------------------
# Wrapper
# --------------------------------------------------------------------------
def hypergcn_forward(x, H, params, *, residual=True, tile_n=None,
                     num_node_partitions=2):
    """Fused HyperGCN forward pass.

    x : (N, nhid) float32 node features
    H : (N, E)    float32 dense (binary) hypergraph incidence matrix
    """
    N, nhid = x.shape
    E = H.shape[1]
    num_classes = params["lin_w"].shape[0]

    # Padded, TPU-friendly sizes (lane dims -> multiples of 128).
    f_pad = _round_up(nhid, 128)
    e_pad = _round_up(E, 128)
    c_pad = _round_up(num_classes, 128)

    vmem_limit = _pick_vmem_limit()
    tile = _auto_tile(N, e_pad, f_pad, c_pad, vmem_limit, tile_n)
    P = max(1, int(num_node_partitions))       # node partitions ("parallel" axis)
    n_pad = _round_up(N, tile * P)
    tpp = n_pad // (tile * P)                  # node tiles per partition
    n_tiles = P * tpp

    # Degree normalization kept OFF the incidence matrix: H stays binary int8
    # (halves HBM traffic vs. bf16 HL) and dv^{-1/2} / De^{-1} are applied as
    # f32 row scales (in-kernel) / a wrapper multiply between passes.
    dv = jnp.clip(jnp.sum(H, axis=1), 1.0, None)                    # node degrees
    de = jnp.clip(jnp.sum(H, axis=0), 1.0, None)                    # edge degrees
    dv_col = jnp.pad(dv ** -0.5, (0, n_pad - N)).reshape(n_pad, 1).astype(jnp.float32)
    de_inv = jnp.pad(1.0 / de, (0, e_pad - E)).astype(jnp.float32)  # (e_pad,)

    h_i8 = jnp.pad(H, ((0, n_pad - N), (0, e_pad - E))).astype(jnp.int8)
    x_p = jnp.pad(x, ((0, n_pad - N), (0, f_pad - nhid))).astype(jnp.bfloat16)

    def pad_w(w, r, c):
        return jnp.pad(w, ((0, r - w.shape[0]),
                           (0, c - w.shape[1]))).astype(jnp.bfloat16)

    def pad_b(b, c):
        return jnp.pad(b, (0, c - b.shape[0])).reshape(1, c).astype(jnp.float32)

    # HypergraphConv Thetas are stored (in, out); torch Linears are (out, in).
    wcat = jnp.concatenate([pad_w(params["hgc1_w"], f_pad, f_pad),
                            pad_w(params["down_w"].T, f_pad, f_pad)], axis=1)
    w2_p = pad_w(params["hgc2_w"], f_pad, f_pad)
    wl_p = pad_w(params["lin_w"].T, f_pad, c_pad)
    b1 = pad_b(params["hgc1_b"], f_pad)
    b2 = pad_b(params["hgc2_b"], f_pad)
    bd = pad_b(params["down_b"], f_pad)
    bl = pad_b(params["lin_b"], c_pad)

    def run(buffered_once):
        def inv(shape):
            # Grid-invariant block: single buffer (it is DMA'd exactly once).
            if buffered_once:
                return pl.BlockSpec(shape, lambda *_: (0, 0),
                                    pipeline_mode=pl.Buffered(1))
            return pl.BlockSpec(shape, lambda *_: (0, 0))

        def node2(width):                       # node-tile spec, (partition, tile) grid
            return pl.BlockSpec((tile, width), lambda p, i: (p * tpp + i, 0))

        def node1(width):                       # node-tile spec, flat grid
            return pl.BlockSpec((tile, width), lambda i: (i, 0))

        cp_reduce = pltpu.CompilerParams(
            dimension_semantics=("parallel", "arbitrary"),
            vmem_limit_bytes=vmem_limit)
        cp_parallel = pltpu.CompilerParams(
            dimension_semantics=("parallel",),
            vmem_limit_bytes=vmem_limit)

        # ---- Pass 1: per-partition M1 partial sums + fused origin projection.
        m1_parts, origin = pl.pallas_call(
            functools.partial(_edge_agg_kernel, f_pad=f_pad),
            grid=(P, tpp),
            in_specs=[node2(f_pad),                    # x tile        (bf16)
                      node2(e_pad),                    # H tile        (int8)
                      inv((f_pad, 2 * f_pad)),         # [W1 | Wd]     (bf16)
                      inv((1, f_pad)),                 # bd            (f32)
                      node2(1)],                       # dv^{-1/2}     (f32)
            out_specs=[pl.BlockSpec((e_pad, f_pad), lambda p, i: (p, 0)),
                       node2(f_pad)],                  # origin tile   (bf16)
            out_shape=[jax.ShapeDtypeStruct((P * e_pad, f_pad), jnp.float32),
                       jax.ShapeDtypeStruct((n_pad, f_pad), jnp.bfloat16)],
            compiler_params=cp_reduce,
        )(x_p, h_i8, wcat, bd, dv_col)

        # De^{-1} + partition reduction + bf16 downcast in the wrapper (tiny).
        m1b = (m1_parts.reshape(P, e_pad, f_pad).sum(axis=0)
               * de_inv[:, None]).astype(jnp.bfloat16)

        # ---- Pass 2: layer-1 activation per tile + per-partition M2 partials.
        m2_parts = pl.pallas_call(
            _mid_kernel,
            grid=(P, tpp),
            in_specs=[node2(e_pad),                    # H tile        (int8)
                      node2(1),                        # dv^{-1/2}     (f32)
                      inv((e_pad, f_pad)),             # M1            (bf16)
                      inv((f_pad, f_pad)),             # W2            (bf16)
                      inv((1, f_pad))],                # b1            (f32)
            out_specs=pl.BlockSpec((e_pad, f_pad), lambda p, i: (p, 0)),
            out_shape=jax.ShapeDtypeStruct((P * e_pad, f_pad), jnp.float32),
            compiler_params=cp_reduce,
        )(h_i8, dv_col, m1b, w2_p, b1)

        m2b = (m2_parts.reshape(P, e_pad, f_pad).sum(axis=0)
               * de_inv[:, None]).astype(jnp.bfloat16)

        # ---- Pass 3: layer 2 + residual + lin + log_softmax per node tile.
        return pl.pallas_call(
            functools.partial(_node_out_kernel, num_classes=num_classes,
                              residual=residual),
            grid=(n_tiles,),
            in_specs=[node1(e_pad),                    # H tile        (int8)
                      node1(1),                        # dv^{-1/2}     (f32)
                      node1(f_pad),                    # origin tile   (bf16)
                      inv((e_pad, f_pad)),             # M2            (bf16)
                      inv((1, f_pad)),                 # b2            (f32)
                      inv((f_pad, c_pad)),             # Wl            (bf16)
                      inv((1, c_pad))],                # bl            (f32)
            out_specs=node1(c_pad),
            out_shape=jax.ShapeDtypeStruct((n_pad, c_pad), jnp.float32),
            compiler_params=cp_parallel,
        )(h_i8, dv_col, origin, m2b, b2, wl_p, bl)

    try:
        out = run(True)
    except Exception:
        # pipeline_mode=pl.Buffered(1) unsupported on this JAX/Mosaic version;
        # retry with default double-buffering (identical semantics).
        out = run(False)

    return out[:N, :num_classes]


# --------------------------------------------------------------------------
# Pure-JAX f32 reference (same HGNN formulation) and synthetic params.
# --------------------------------------------------------------------------
def hypergcn_ref(x, H, params, *, residual=True):
    dv = jnp.clip(jnp.sum(H, axis=1), 1.0, None)
    de = jnp.clip(jnp.sum(H, axis=0), 1.0, None)
    hl = H * (dv ** -0.5)[:, None]
    hr = (hl / de[None, :]).T

    def conv(h, w, b):
        return hl @ (hr @ (h @ w)) + b

    origin = x @ params["down_w"].T + params["down_b"]
    h = jnp.tanh(conv(x, params["hgc1_w"], params["hgc1_b"]))
    h = jnp.tanh(conv(h, params["hgc2_w"], params["hgc2_b"]))
    if residual:
        h = h + origin
    logits = h @ params["lin_w"].T + params["lin_b"]
    return jax.nn.log_softmax(logits, axis=-1)


def init_params(key, nhid, num_classes):
    ks = jax.random.split(key, 8)
    s = 0.1
    return {
        # HypergraphConv Thetas stored (in, out) like PyG.
        "hgc1_w": s * jax.random.normal(ks[0], (nhid, nhid), jnp.float32),
        "hgc1_b": s * jax.random.normal(ks[1], (nhid,), jnp.float32),
        "hgc2_w": s * jax.random.normal(ks[2], (nhid, nhid), jnp.float32),
        "hgc2_b": s * jax.random.normal(ks[3], (nhid,), jnp.float32),
        # nn.Linear weights stored (out, in) like torch.
        "down_w": s * jax.random.normal(ks[4], (nhid, nhid), jnp.float32),
        "down_b": s * jax.random.normal(ks[5], (nhid,), jnp.float32),
        "lin_w": s * jax.random.normal(ks[6], (num_classes, nhid), jnp.float32),
        "lin_b": s * jax.random.normal(ks[7], (num_classes,), jnp.float32),
    }


if __name__ == "__main__":
    key = jax.random.PRNGKey(0)
    k_x, k_h, k_p = jax.random.split(key, 3)

    # Small, deliberately non-aligned Planetoid-like sizes to exercise the
    # node-tile grid, the 2-way partition split, and all lane padding paths.
    N, E, nhid, num_classes = 96, 24, 32, 7

    x = jax.random.normal(k_x, (N, nhid), jnp.float32)
    H = (jax.random.uniform(k_h, (N, E)) < 0.25).astype(jnp.float32)
    params = init_params(k_p, nhid, num_classes)

    out = hypergcn_forward(x, H, params, residual=True, tile_n=32)
    jax.block_until_ready(out)

    assert out.shape == (N, num_classes)
    # log_softmax rows should sum to ~1 in probability space.
    assert bool(jnp.allclose(jnp.sum(jnp.exp(out), axis=-1), 1.0, atol=1e-4))
    # Matches the pure-JAX f32 reference (bf16 MXU inputs -> loose tolerance).
    ref = hypergcn_ref(x, H, params, residual=True)
    assert bool(jnp.max(jnp.abs(out - ref)) < 0.1)

    # TODO(synk): F.dropout(training=True) path omitted — inference mode only.
    print("KERNEL_OK")
</pallas_src>

<mosaic_0001>
module attributes {stable_mosaic.version = 11 : i64} {
  func.func @_edge_agg_kernel(%arg0: i32, %arg1: i32, %arg2: memref<32x128xbf16, #tpu.memory_space<vmem>>, %arg3: memref<32x128xi8, #tpu.memory_space<vmem>>, %arg4: memref<128x256xbf16, #tpu.memory_space<vmem>>, %arg5: memref<1x128xf32, #tpu.memory_space<vmem>>, %arg6: memref<32x1xf32, #tpu.memory_space<vmem>>, %arg7: memref<128x128xf32, #tpu.memory_space<vmem>>, %arg8: memref<32x128xbf16, #tpu.memory_space<vmem>>) attributes {dimension_semantics = [#tpu.dimension_semantics<parallel>, #tpu.dimension_semantics<arbitrary>], iteration_bounds = array<i64: 2, 2>, scalar_prefetch = 0 : i64, scratch_operands = 0 : i64, tpu.core_type = #tpu.core_type<tc>, window_params = [{transform_indices = @transform_0, window_bounds = array<i64: 32, 128>}, {transform_indices = @transform_1, window_bounds = array<i64: 32, 128>}, {pipeline_mode = #tpu.pipeline_mode<synchronous>, transform_indices = @transform_2, window_bounds = array<i64: 128, 256>}, {pipeline_mode = #tpu.pipeline_mode<synchronous>, transform_indices = @transform_3, window_bounds = array<i64: 1, 128>}, {transform_indices = @transform_4, window_bounds = array<i64: 32, 1>}, {transform_indices = @transform_5, window_bounds = array<i64: 128, 128>}, {transform_indices = @transform_6, window_bounds = array<i64: 32, 128>}]} {
    %c0_i32 = arith.constant 0 : i32
    %0 = arith.cmpi eq, %arg1, %c0_i32 : i32
    %1 = arith.extui %0 : i1 to i32
    %c0_i32_0 = arith.constant 0 : i32
    %2 = arith.cmpi ne, %1, %c0_i32_0 : i32
    scf.if %2 {
      %cst_17 = arith.constant 0.000000e+00 : f32
      %23 = vector.broadcast %cst_17 : f32 to vector<128x128xf32>
      %c0_18 = arith.constant 0 : index
      %c0_19 = arith.constant 0 : index
      %24 = vector.load %arg7[%c0_18, %c0_19] : memref<128x128xf32, #tpu.memory_space<vmem>>, vector<128x128xf32>
      tpu.vector_store %arg7[%c0_18, %c0_19], %23 {strides = array<i32>} : memref<128x128xf32, #tpu.memory_space<vmem>>, vector<128x128xf32>,
    } else {
    }
    %c0 = arith.constant 0 : index
    %c0_1 = arith.constant 0 : index
    %3 = vector.load %arg2[%c0, %c0_1] : memref<32x128xbf16, #tpu.memory_space<vmem>>, vector<32x128xbf16>
    %c0_2 = arith.constant 0 : index
    %c0_3 = arith.constant 0 : index
    %4 = vector.load %arg4[%c0_2, %c0_3] : memref<128x256xbf16, #tpu.memory_space<vmem>>, vector<128x256xbf16>
    %cst = arith.constant dense<0.000000e+00> : vector<32x256xf32>
    %5 = tpu.matmul %3, %4, %cst {dimension_numbers = #tpu.dot_dimension_numbers<[1], [0], [0], [1], [0, 0, 1, 1], [], []>} : vector<32x128xbf16>, vector<128x256xbf16>, vector<32x256xf32> -> vector<32x256xf32>
    %6 = vector.extract_strided_slice %5 {offsets = [0, 128], sizes = [32, 128], strides = [1, 1]} : vector<32x256xf32> to vector<32x128xf32>
    %c0_4 = arith.constant 0 : index
    %c0_5 = arith.constant 0 : index
    %7 = vector.load %arg5[%c0_4, %c0_5] : memref<1x128xf32, #tpu.memory_space<vmem>>, vector<1x128xf32>
    %8 = vector.broadcast %7 : vector<1x128xf32> to vector<32x128xf32>
    %9 = arith.addf %6, %8 : vector<32x128xf32>
    %10 = arith.truncf %9 : vector<32x128xf32> to vector<32x128xbf16>
    %c0_6 = arith.constant 0 : index
    %c0_7 = arith.constant 0 : index
    %11 = vector.load %arg8[%c0_6, %c0_7] : memref<32x128xbf16, #tpu.memory_space<vmem>>, vector<32x128xbf16>
    tpu.vector_store %arg8[%c0_6, %c0_7], %10 {strides = array<i32>} : memref<32x128xbf16, #tpu.memory_space<vmem>>, vector<32x128xbf16>,
    %12 = vector.extract_strided_slice %5 {offsets = [0, 0], sizes = [32, 128], strides = [1, 1]} : vector<32x256xf32> to vector<32x128xf32>
    %c0_8 = arith.constant 0 : index
    %c0_9 = arith.constant 0 : index
    %13 = vector.load %arg6[%c0_8, %c0_9] : memref<32x1xf32, #tpu.memory_space<vmem>>, vector<32x1xf32>
    %14 = vector.broadcast %13 : vector<32x1xf32> to vector<32x128xf32>
    %15 = arith.mulf %12, %14 : vector<32x128xf32>
    %16 = arith.truncf %15 : vector<32x128xf32> to vector<32x128xbf16>
    %c0_10 = arith.constant 0 : index
    %c0_11 = arith.constant 0 : index
    %17 = vector.load %arg3[%c0_10, %c0_11] : memref<32x128xi8, #tpu.memory_space<vmem>>, vector<32x128xi8>
    %18 = arith.sitofp %17 : vector<32x128xi8> to vector<32x128xbf16>
    %c0_12 = arith.constant 0 : index
    %c0_13 = arith.constant 0 : index
    %19 = vector.load %arg7[%c0_12, %c0_13] : memref<128x128xf32, #tpu.memory_space<vmem>>, vector<128x128xf32>
    %cst_14 = arith.constant dense<0.000000e+00> : vector<128x128xf32>
    %20 = tpu.matmul %18, %16, %cst_14 {dimension_numbers = #tpu.dot_dimension_numbers<[0], [0], [1], [1], [0, 1, 1, 1], [], []>} : vector<32x128xbf16>, vector<32x128xbf16>, vector<128x128xf32> -> vector<128x128xf32>
    %21 = arith.addf %19, %20 : vector<128x128xf32>
    %c0_15 = arith.constant 0 : index
    %c0_16 = arith.constant 0 : index
    %22 = vector.load %arg7[%c0_15, %c0_16] : memref<128x128xf32, #tpu.memory_space<vmem>>, vector<128x128xf32>
    tpu.vector_store %arg7[%c0_15, %c0_16], %21 {strides = array<i32>} : memref<128x128xf32, #tpu.memory_space<vmem>>, vector<128x128xf32>,
    return
  }
  func.func @transform_0(%arg0: i32, %arg1: i32) -> (i32, i32) {
    %c2_i32 = arith.constant 2 : i32
    %0 = arith.muli %arg0, %c2_i32 : i32
    %1 = arith.addi %0, %arg1 : i32
    %c0_i32 = arith.constant 0 : i32
    %c0_i32_0 = arith.constant 0 : i32
    return %1, %c0_i32 : i32, i32
  }
  func.func @transform_1(%arg0: i32, %arg1: i32) -> (i32, i32) {
    %c2_i32 = arith.constant 2 : i32
    %0 = arith.muli %arg0, %c2_i32 : i32
    %1 = arith.addi %0, %arg1 : i32
    %c0_i32 = arith.constant 0 : i32
    %c0_i32_0 = arith.constant 0 : i32
    return %1, %c0_i32 : i32, i32
  }
  func.func @transform_2(%arg0: i32, %arg1: i32) -> (i32, i32) {
    %c0_i32 = arith.constant 0 : i32
    %c0_i32_0 = arith.constant 0 : i32
    %c0_i32_1 = arith.constant 0 : i32
    return %c0_i32, %c0_i32_0 : i32, i32
  }
  func.func @transform_3(%arg0: i32, %arg1: i32) -> (i32, i32) {
    %c0_i32 = arith.constant 0 : i32
    %c0_i32_0 = arith.constant 0 : i32
    %c0_i32_1 = arith.constant 0 : i32
    return %c0_i32, %c0_i32_0 : i32, i32
  }
  func.func @transform_4(%arg0: i32, %arg1: i32) -> (i32, i32) {
    %c2_i32 = arith.constant 2 : i32
    %0 = arith.muli %arg0, %c2_i32 : i32
    %1 = arith.addi %0, %arg1 : i32
    %c0_i32 = arith.constant 0 : i32
    %c0_i32_0 = arith.constant 0 : i32
    return %1, %c0_i32 : i32, i32
  }
  func.func @transform_5(%arg0: i32, %arg1: i32) -> (i32, i32) {
    %c0_i32 = arith.constant 0 : i32
    %c0_i32_0 = arith.constant 0 : i32
    return %arg0, %c0_i32 : i32, i32
  }
  func.func @transform_6(%arg0: i32, %arg1: i32) -> (i32, i32) {
    %c2_i32 = arith.constant 2 : i32
    %0 = arith.muli %arg0, %c2_i32 : i32
    %1 = arith.addi %0, %arg1 : i32
    %c0_i32 = arith.constant 0 : i32
    %c0_i32_0 = arith.constant 0 : i32
    return %1, %c0_i32 : i32, i32
  }
}

module attributes {stable_mosaic.version = 11 : i64} {
  func.func @_edge_agg_kernel(%arg0: i32, %arg1: i32, %arg2: memref<32x128xbf16, #tpu.memory_space<vmem>>, %arg3: memref<32x128xi8, #tpu.memory_space<vmem>>, %arg4: memref<128x256xbf16, #tpu.memory_space<vmem>>, %arg5: memref<1x128xf32, #tpu.memory_space<vmem>>, %arg6: memref<32x1xf32, #tpu.memory_space<vmem>>, %arg7: memref<128x128xf32, #tpu.memory_space<vmem>>, %arg8: memref<32x128xbf16, #tpu.memory_space<vmem>>) attributes {dimension_semantics = [#tpu.dimension_semantics<parallel>, #tpu.dimension_semantics<arbitrary>], iteration_bounds = array<i64: 2, 2>, scalar_prefetch = 0 : i64, scratch_operands = 0 : i64, tpu.core_type = #tpu.core_type<tc>, window_params = [{transform_indices = @transform_0, window_bounds = array<i64: 32, 128>}, {transform_indices = @transform_1, window_bounds = array<i64: 32, 128>}, {pipeline_mode = #tpu.pipeline_mode<synchronous>, transform_indices = @transform_2, window_bounds = array<i64: 128, 256>}, {pipeline_mode = #tpu.pipeline_mode<synchronous>, transform_indices = @transform_3, window_bounds = array<i64: 1, 128>}, {transform_indices = @transform_4, window_bounds = array<i64: 32, 1>}, {transform_indices = @transform_5, window_bounds = array<i64: 128, 128>}, {transform_indices = @transform_6, window_bounds = array<i64: 32, 128>}]} {
    %c0_i32 = arith.constant 0 : i32
    %0 = arith.cmpi eq, %arg1, %c0_i32 : i32
    %1 = arith.extui %0 : i1 to i32
    %c0_i32_0 = arith.constant 0 : i32
    %2 = arith.cmpi ne, %1, %c0_i32_0 : i32
    scf.if %2 {
      %cst_17 = arith.constant 0.000000e+00 : f32
      %23 = vector.broadcast %cst_17 : f32 to vector<128x128xf32>
      %c0_18 = arith.constant 0 : index
      %c0_19 = arith.constant 0 : index
      %24 = vector.load %arg7[%c0_18, %c0_19] : memref<128x128xf32, #tpu.memory_space<vmem>>, vector<128x128xf32>
      tpu.vector_store %arg7[%c0_18, %c0_19], %23 {strides = array<i32>} : memref<128x128xf32, #tpu.memory_space<vmem>>, vector<128x128xf32>,
    } else {
    }
    %c0 = arith.constant 0 : index
    %c0_1 = arith.constant 0 : index
    %3 = vector.load %arg2[%c0, %c0_1] : memref<32x128xbf16, #tpu.memory_space<vmem>>, vector<32x128xbf16>
    %c0_2 = arith.constant 0 : index
    %c0_3 = arith.constant 0 : index
    %4 = vector.load %arg4[%c0_2, %c0_3] : memref<128x256xbf16, #tpu.memory_space<vmem>>, vector<128x256xbf16>
    %cst = arith.constant dense<0.000000e+00> : vector<32x256xf32>
    %5 = tpu.matmul %3, %4, %cst {dimension_numbers = #tpu.dot_dimension_numbers<[1], [0], [0], [1], [0, 0, 1, 1], [], []>} : vector<32x128xbf16>, vector<128x256xbf16>, vector<32x256xf32> -> vector<32x256xf32>
    %6 = vector.extract_strided_slice %5 {offsets = [0, 128], sizes = [32, 128], strides = [1, 1]} : vector<32x256xf32> to vector<32x128xf32>
    %c0_4 = arith.constant 0 : index
    %c0_5 = arith.constant 0 : index
    %7 = vector.load %arg5[%c0_4, %c0_5] : memref<1x128xf32, #tpu.memory_space<vmem>>, vector<1x128xf32>
    %8 = vector.broadcast %7 : vector<1x128xf32> to vector<32x128xf32>
    %9 = arith.addf %6, %8 : vector<32x128xf32>
    %10 = arith.truncf %9 : vector<32x128xf32> to vector<32x128xbf16>
    %c0_6 = arith.constant 0 : index
    %c0_7 = arith.constant 0 : index
    %11 = vector.load %arg8[%c0_6, %c0_7] : memref<32x128xbf16, #tpu.memory_space<vmem>>, vector<32x128xbf16>
    tpu.vector_store %arg8[%c0_6, %c0_7], %10 {strides = array<i32>} : memref<32x128xbf16, #tpu.memory_space<vmem>>, vector<32x128xbf16>,
    %12 = vector.extract_strided_slice %5 {offsets = [0, 0], sizes = [32, 128], strides = [1, 1]} : vector<32x256xf32> to vector<32x128xf32>
    %c0_8 = arith.constant 0 : index
    %c0_9 = arith.constant 0 : index
    %13 = vector.load %arg6[%c0_8, %c0_9] : memref<32x1xf32, #tpu.memory_space<vmem>>, vector<32x1xf32>
    %14 = vector.broadcast %13 : vector<32x1xf32> to vector<32x128xf32>
    %15 = arith.mulf %12, %14 : vector<32x128xf32>
    %16 = arith.truncf %15 : vector<32x128xf32> to vector<32x128xbf16>
    %c0_10 = arith.constant 0 : index
    %c0_11 = arith.constant 0 : index
    %17 = vector.load %arg3[%c0_10, %c0_11] : memref<32x128xi8, #tpu.memory_space<vmem>>, vector<32x128xi8>
    %18 = arith.sitofp %17 : vector<32x128xi8> to vector<32x128xbf16>
    %c0_12 = arith.constant 0 : index
    %c0_13 = arith.constant 0 : index
    %19 = vector.load %arg7[%c0_12, %c0_13] : memref<128x128xf32, #tpu.memory_space<vmem>>, vector<128x128xf32>
    %cst_14 = arith.constant dense<0.000000e+00> : vector<128x128xf32>
    %20 = tpu.matmul %18, %16, %cst_14 {dimension_numbers = #tpu.dot_dimension_numbers<[0], [0], [1], [1], [0, 1, 1, 1], [], []>} : vector<32x128xbf16>, vector<32x128xbf16>, vector<128x128xf32> -> vector<128x128xf32>
    %21 = arith.addf %19, %20 : vector<128x128xf32>
    %c0_15 = arith.constant 0 : index
    %c0_16 = arith.constant 0 : index
    %22 = vector.load %arg7[%c0_15, %c0_16] : memref<128x128xf32, #tpu.memory_space<vmem>>, vector<128x128xf32>
    tpu.vector_store %arg7[%c0_15, %c0_16], %21 {strides = array<i32>} : memref<128x128xf32, #tpu.memory_space<vmem>>, vector<128x128xf32>,
    return
  }
  func.func @transform_0(%arg0: i32, %arg1: i32) -> (i32, i32) {
    %c2_i32 = arith.constant 2 : i32
    %0 = arith.muli %arg0, %c2_i32 : i32
    %1 = arith.addi %0, %arg1 : i32
    %c0_i32 = arith.constant 0 : i32
    %c0_i32_0 = arith.constant 0 : i32
    return %1, %c0_i32 : i32, i32
  }
  func.func @transform_1(%arg0: i32, %arg1: i32) -> (i32, i32) {
    %c2_i32 = arith.constant 2 : i32
    %0 = arith.muli %arg0, %c2_i32 : i32
    %1 = arith.addi %0, %arg1 : i32
    %c0_i32 = arith.constant 0 : i32
    %c0_i32_0 = arith.constant 0 : i32
    return %1, %c0_i32 : i32, i32
  }
  func.func @transform_2(%arg0: i32, %arg1: i32) -> (i32, i32) {
    %c0_i32 = arith.constant 0 : i32
    %c0_i32_0 = arith.constant 0 : i32
    %c0_i32_1 = arith.constant 0 : i32
    return %c0_i32, %c0_i32_0 : i32, i32
  }
  func.func @transform_3(%arg0: i32, %arg1: i32) -> (i32, i32) {
    %c0_i32 = arith.constant 0 : i32
    %c0_i32_0 = arith.constant 0 : i32
    %c0_i32_1 = arith.constant 0 : i32
    return %c0_i32, %c0_i32_0 : i32, i32
  }
  func.func @transform_4(%arg0: i32, %arg1: i32) -> (i32, i32) {
    %c2_i32 = arith.constant 2 : i32
    %0 = arith.muli %arg0, %c2_i32 : i32
    %1 = arith.addi %0, %arg1 : i32
    %c0_i32 = arith.constant 0 : i32
    %c0_i32_0 = arith.constant 0 : i32
    return %1, %c0_i32 : i32, i32
  }
  func.func @transform_5(%arg0: i32, %arg1: i32) -> (i32, i32) {
    %c0_i32 = arith.constant 0 : i32
    %c0_i32_0 = arith.constant 0 : i32
    return %arg0, %c0_i32 : i32, i32
  }
  func.func @transform_6(%arg0: i32, %arg1: i32) -> (i32, i32) {
    %c2_i32 = arith.constant 2 : i32
    %0 = arith.muli %arg0, %c2_i32 : i32
    %1 = arith.addi %0, %arg1 : i32
    %c0_i32 = arith.constant 0 : i32
    %c0_i32_0 = arith.constant 0 : i32
    return %1, %c0_i32 : i32, i32
  }
}

</mosaic_0001>

<llo_original>
// kernel: tpu_custom_call.1
$region0: #{tpu_custom_call.1}
  #allocation0 [shape = 'u32[]', space=smem, size = 0x4, offset = 0x4, fixed_abs, tag = 'smem constant byte address 0x4 - core index']
  #allocation1 [shape = 'u32[144,128]{1,0:T(1,128)}', space=vmem, size = 0x12000, scoped, tag = 'internal scratch']
  %s0 = inlined_call_operand.hbm [shape: bf16[128,128], index: 0, kind: input, shape index: {}]
  %s1 = inlined_call_operand.hbm [shape: s8[128,128], index: 1, kind: input, shape index: {}]
  %s2 = inlined_call_operand.vmem [shape: bf16[128,256], index: 2, kind: input, shape index: {}]
  %s3 = inlined_call_operand.vmem [shape: f32[1,128], index: 3, kind: input, shape index: {}]
  %s4 = inlined_call_operand.vmem [shape: f32[128,1], index: 4, kind: input, shape index: {}]
  %s5 = inlined_call_operand.hbm [shape: f32[256,128], index: 5, kind: output, shape index: {0}]
  %s6 = inlined_call_operand.hbm [shape: bf16[128,128], index: 6, kind: output, shape index: {1}]
  %7 = xla_tuple %s5, %s6
  %s8 = sld [smem:[#allocation0]]
  $region73: #{tpu_custom_call.1} parent=0
    _
  %s10 = ssub.s32 1, %s8
  %s11 = scalar_select 0, %s10, %s8
  $region1: #{tpu_custom_call.1} parent=0
    #allocation2 [shape = 'u8[16384]{0}', space=vmem, size = 0x4000, scoped, tag = 'input window, operand 0']
    #allocation3 [shape = 's32[2]{0}', space=sflag, size = 0x8, scoped, tag = 'scoped memory for tpu_custom_call.1']
    #allocation4 [shape = 's32[2]{0}', space=sflag, size = 0x8, scoped, tag = 'scoped memory for tpu_custom_call.1']
    #allocation5 [shape = 'u8[8192]{0}', space=vmem, size = 0x2000, scoped, tag = 'input window, operand 1']
    #allocation6 [shape = 's32[2]{0}', space=sflag, size = 0x8, scoped, tag = 'scoped memory for tpu_custom_call.1']
    #allocation7 [shape = 'u8[131072]{0}', space=vmem, size = 0x20000, scoped, tag = 'output window, operand 0']
    #allocation8 [shape = 'u8[16384]{0}', space=vmem, size = 0x4000, scoped, tag = 'output window, operand 1']
    #allocation9 [shape = 's32[2]{0}', space=sflag, size = 0x8, scoped, tag = 'scoped memory for tpu_custom_call.1']
    %12 = vsyncpa [#allocation3], 0
    %s13 = scalar_lea.sflag [#allocation3], 1
    %14 = vsyncpa %s13, 0
    %15 = vsyncpa [#allocation6], 0
    %s16 = scalar_lea.sflag [#allocation6], 1
    %17 = vsyncpa %s16, 0
    %18 = vsyncpa [#allocation4], 0
    %s19 = scalar_lea.sflag [#allocation4], 1
    %20 = vsyncpa %s19, 0
    %21 = vsyncpa [#allocation9], 0
    %s22 = scalar_lea.sflag [#allocation9], 1
    %23 = vsyncpa %s22, 0
    loop: start=0, step=1, limit=6
    $region2: #{tpu_custom_call.1} parent=1 // loop_pre_header
      _
    $region3: #{tpu_custom_call.1} parent=1 // loop_header
      %s25 = sphi 0, %s29
      %p26 = scmp.ge.s32.totalorder %s25, 6
      %s32 = sphi 0, %s44
      %s33 = sphi 0, %s40
      %s34 = sphi 0, %s32
      %s35 = sphi 0, %s33
      %s36 = sphi 0, %s34
      %s37 = sphi 0, %s35
      %s51 = sphi 0, %s53
      %s54 = sphi 0, %s51
      %s55 = sphi 0, %s54
      %s71 = sphi 0, %s55
      %s81 = sphi 0, %s83
      %s84 = sphi 0, %s81
      %s85 = sphi 0, %s84
      %s101 = sphi 0, %s85
      %s105 = sphi 0, %s105
      %s107 = sphi 0, %s105
      %s108 = sphi 0, %s107
      %s122 = sphi 0, %s108
      %s126 = sphi 0, %s126
      %s128 = sphi 0, %s126
      %s129 = sphi 0, %s128
      %s143 = sphi 0, %s129
      %s153 = sphi 0, %s155
      %s156 = sphi 0, %s153
      %s157 = sphi 0, %s156
      %s173 = sphi 0, %s157
      %s179 = sphi 0, %s181
      %s182 = sphi 0, %s179
      %s183 = sphi 0, %s182
      %s199 = sphi 0, %s183
      %s209 = sphi 0, %s211
      %s212 = sphi 0, %s209
      %s213 = sphi 0, %s212
      %s229 = sphi 0, %s213
    $region4: #{tpu_custom_call.1} parent=1 // loop_header_branch
      %28 = sbr.rel (%p26) target = $region8
    $region5: #{tpu_custom_call.1} parent=1 // loop_body
      %s30 = ssub.s32 %s25, 1
      %s31 = ssub.s32 %s25, 2
      %s38 = sadd.s32 1, %s33
      %p39 = scmp.ge.s32.totalorder %s38, 2
      %s40 = scalar_select %p39, 0, %s38
      %s41 = sadd.s32 1, %s32
      %s42 = scalar_select %p39, %s41, %s32
      %p43 = scmp.ge.s32.totalorder %s42, 2
      %s44 = scalar_select %p43, 0, %s42
      %s45 = smul.u32 %s32, 2
      %s46 = sadd.s32 %s45, %s33
      %s47 = smul.u32 %s44, 2
      %s48 = sadd.s32 %s47, %s40
      %s49 = ssub.s32 %s46, %s48
      %p50 = scmp.eq.s32.totalorder %s49, 0
      %s52 = sadd.s32 %s51, 1
      %s53 = scalar_select %p50, %s51, %s52
      %p56 = pneg %p50
      %p57 = scmp.eq.s32.totalorder %s25, 3
      %p58 = por %p56, %p57
      %p59 = scmp.ne.s32.totalorder %s51, %s54
      %p60 = scmp.eq.s32.totalorder %s25, 0
      %p61 = por %p59, %p60
      %p62 = scmp.ne.s32.totalorder %s51, %s54
      %p63 = scmp.eq.s32.totalorder %s30, 3
      %p64 = por %p62, %p63
      %p65 = scmp.ne.s32.totalorder %s54, %s55
      %p66 = scmp.eq.s32.totalorder %s30, 0
      %p67 = por %p65, %p66
      %p68 = scmp.ne.s32.totalorder %s54, %s55
      %p69 = scmp.eq.s32.totalorder %s31, 3
      %p70 = por %p68, %p69
      %p72 = scmp.ne.s32.totalorder %s55, %s71
      %p73 = scmp.eq.s32.totalorder %s31, 0
      %p74 = por %p72, %p73
      %s75 = smul.u32 %s32, 2
      %s76 = sadd.s32 %s75, %s33
      %s77 = smul.u32 %s44, 2
      %s78 = sadd.s32 %s77, %s40
      %s79 = ssub.s32 %s76, %s78
      %p80 = scmp.eq.s32.totalorder %s79, 0
      %s82 = sadd.s32 %s81, 1
      %s83 = scalar_select %p80, %s81, %s82
      %p86 = pneg %p80
      %p87 = scmp.eq.s32.totalorder %s25, 3
      %p88 = por %p86, %p87
      %p89 = scmp.ne.s32.totalorder %s81, %s84
      %p90 = scmp.eq.s32.totalorder %s25, 0
      %p91 = por %p89, %p90
      %p92 = scmp.ne.s32.totalorder %s81, %s84
      %p93 = scmp.eq.s32.totalorder %s30, 3
      %p94 = por %p92, %p93
      %p95 = scmp.ne.s32.totalorder %s84, %s85
      %p96 = scmp.eq.s32.totalorder %s30, 0
      %p97 = por %p95, %p96
      %p98 = scmp.ne.s32.totalorder %s84, %s85
      %p99 = scmp.eq.s32.totalorder %s31, 3
      %p100 = por %p98, %p99
      %p102 = scmp.ne.s32.totalorder %s85, %s101
      %p103 = scmp.eq.s32.totalorder %s31, 0
      %p104 = por %p102, %p103
      %s106 = sadd.s32 %s105, 1
      %p109 = scmp.eq.s32.totalorder %s25, 3
      %p110 = scmp.ne.s32.totalorder %s105, %s107
      %p111 = scmp.eq.s32.totalorder %s25, 0
      %p112 = por %p110, %p111
      %p113 = scmp.ne.s32.totalorder %s105, %s107
      %p114 = scmp.eq.s32.totalorder %s30, 3
      %p115 = por %p113, %p114
      %p116 = scmp.ne.s32.totalorder %s107, %s108
      %p117 = scmp.eq.s32.totalorder %s30, 0
      %p118 = por %p116, %p117
      %p119 = scmp.ne.s32.totalorder %s107, %s108
      %p120 = scmp.eq.s32.totalorder %s31, 3
      %p121 = por %p119, %p120
      %p123 = scmp.ne.s32.totalorder %s108, %s122
      %p124 = scmp.eq.s32.totalorder %s31, 0
      %p125 = por %p123, %p124
      %s127 = sadd.s32 %s126, 1
      %p130 = scmp.eq.s32.totalorder %s25, 3
      %p131 = scmp.ne.s32.totalorder %s126, %s128
      %p132 = scmp.eq.s32.totalorder %s25, 0
      %p133 = por %p131, %p132
      %p134 = scmp.ne.s32.totalorder %s126, %s128
      %p135 = scmp.eq.s32.totalorder %s30, 3
      %p136 = por %p134, %p135
      %p137 = scmp.ne.s32.totalorder %s128, %s129
      %p138 = scmp.eq.s32.totalorder %s30, 0
      %p139 = por %p137, %p138
      %p140 = scmp.ne.s32.totalorder %s128, %s129
      %p141 = scmp.eq.s32.totalorder %s31, 3
      %p142 = por %p140, %p141
      %p144 = scmp.ne.s32.totalorder %s129, %s143
      %p145 = scmp.eq.s32.totalorder %s31, 0
      %p146 = por %p144, %p145
      %s147 = smul.u32 %s32, 2
      %s148 = sadd.s32 %s147, %s33
      %s149 = smul.u32 %s44, 2
      %s150 = sadd.s32 %s149, %s40
      %s151 = ssub.s32 %s148, %s150
      %p152 = scmp.eq.s32.totalorder %s151, 0
      %s154 = sadd.s32 %s153, 1
      %s155 = scalar_select %p152, %s153, %s154
      %p158 = pneg %p152
      %p159 = scmp.eq.s32.totalorder %s25, 3
      %p160 = por %p158, %p159
      %p161 = scmp.ne.s32.totalorder %s153, %s156
      %p162 = scmp.eq.s32.totalorder %s25, 0
      %p163 = por %p161, %p162
      %p164 = scmp.ne.s32.totalorder %s153, %s156
      %p165 = scmp.eq.s32.totalorder %s30, 3
      %p166 = por %p164, %p165
      %p167 = scmp.ne.s32.totalorder %s156, %s157
      %p168 = scmp.eq.s32.totalorder %s30, 0
      %p169 = por %p167, %p168
      %p170 = scmp.ne.s32.totalorder %s156, %s157
      %p171 = scmp.eq.s32.totalorder %s31, 3
      %p172 = por %p170, %p171
      %p174 = scmp.ne.s32.totalorder %s157, %s173
      %p175 = scmp.eq.s32.totalorder %s31, 0
      %p176 = por %p174, %p175
      %s177 = ssub.s32 %s32, %s44
      %p178 = scmp.eq.s32.totalorder %s177, 0
      %s180 = sadd.s32 %s179, 1
      %s181 = scalar_select %p178, %s179, %s180
      %p184 = pneg %p178
      %p185 = scmp.eq.s32.totalorder %s25, 3
      %p186 = por %p184, %p185
      %p187 = scmp.ne.s32.totalorder %s179, %s182
      %p188 = scmp.eq.s32.totalorder %s25, 0
      %p189 = por %p187, %p188
      %p190 = scmp.ne.s32.totalorder %s179, %s182
      %p191 = scmp.eq.s32.totalorder %s30, 3
      %p192 = por %p190, %p191
      %p193 = scmp.ne.s32.totalorder %s182, %s183
      %p194 = scmp.eq.s32.totalorder %s30, 0
      %p195 = por %p193, %p194
      %p196 = scmp.ne.s32.totalorder %s182, %s183
      %p197 = scmp.eq.s32.totalorder %s31, 3
      %p198 = por %p196, %p197
      %p200 = scmp.ne.s32.totalorder %s183, %s199
      %p201 = scmp.eq.s32.totalorder %s31, 0
      %p202 = por %p200, %p201
      %s203 = smul.u32 %s32, 2
      %s204 = sadd.s32 %s203, %s33
      %s205 = smul.u32 %s44, 2
      %s206 = sadd.s32 %s205, %s40
      %s207 = ssub.s32 %s204, %s206
      %p208 = scmp.eq.s32.totalorder %s207, 0
      %s210 = sadd.s32 %s209, 1
      %s211 = scalar_select %p208, %s209, %s210
      %p214 = pneg %p208
      %p215 = scmp.eq.s32.totalorder %s25, 3
      %p216 = por %p214, %p215
      %p217 = scmp.ne.s32.totalorder %s209, %s212
      %p218 = scmp.eq.s32.totalorder %s25, 0
      %p219 = por %p217, %p218
      %p220 = scmp.ne.s32.totalorder %s209, %s212
      %p221 = scmp.eq.s32.totalorder %s30, 3
      %p222 = por %p220, %p221
      %p223 = scmp.ne.s32.totalorder %s212, %s213
      %p224 = scmp.eq.s32.totalorder %s30, 0
      %p225 = por %p223, %p224
      %p226 = scmp.ne.s32.totalorder %s212, %s213
      %p227 = scmp.eq.s32.totalorder %s31, 3
      %p228 = por %p226, %p227
      %p230 = scmp.ne.s32.totalorder %s213, %s229
      %p231 = scmp.eq.s32.totalorder %s31, 0
      %p232 = por %p230, %p231
      %p233 = scmp.le.s32.totalorder 1, %s25
      %p234 = scmp.lt.s32.totalorder %s25, 5
      %p235 = pnand %p233, %p234
      %p236 = pneg %p235
      // Predicated region
      $region9: #{tpu_custom_call.1} parent=5 // pred_check
        _
      $region10: #{tpu_custom_call.1} parent=5 // pred_check_branch
        %238 = sbr.rel (%p235) target = $region12
      $region11: #{tpu_custom_call.1} parent=5 // pred_region
        %s239 = ssub.s32 %s25, 1
        // Predicated region
        $region13: #{tpu_custom_call.1} parent=11 // pred_check
          %p240 = pneg %p118
        $region14: #{tpu_custom_call.1} parent=11 // pred_check_branch
          %242 = sbr.rel (%p240) target = $region16
        $region15: #{tpu_custom_call.1} parent=11 // pred_region
          _
        $region16: #{tpu_custom_call.1} parent=11 // pred_fallthru
          _
        // Predicated region
        $region17: #{tpu_custom_call.1} parent=11 // pred_check
          %p243 = pneg %p139
        $region18: #{tpu_custom_call.1} parent=11 // pred_check_branch
          %245 = sbr.rel (%p243) target = $region20
        $region19: #{tpu_custom_call.1} parent=11 // pred_region
          _
        $region20: #{tpu_custom_call.1} parent=11 // pred_fallthru
          _
      $region12: #{tpu_custom_call.1} parent=5 // pred_fallthru
        _
      %p246 = scmp.lt.s32.totalorder %s25, 4
      // Predicated region
      $region21: #{tpu_custom_call.1} parent=5 // pred_check
        %p247 = pneg %p246
      $region22: #{tpu_custom_call.1} parent=5 // pred_check_branch
        %249 = sbr.rel (%p247) target = $region24
      $region23: #{tpu_custom_call.1} parent=5 // pred_region
        // Predicated region
        $region25: #{tpu_custom_call.1} parent=23 // pred_check
          %p250 = pneg %p61
        $region26: #{tpu_custom_call.1} parent=23 // pred_check_branch
          %252 = sbr.rel (%p250) target = $region28
        $region27: #{tpu_custom_call.1} parent=23 // pred_region
          %s253 = sand.u32 %s51, 1
          %s254 = scalar_lea.sflag [#allocation3], %s253
          %s255 = sand.u32 %s51, 1
          %s256 = smul.addr %s255, 16
          %s257 = scalar_lea.vmem [#allocation2], %s256
          %s258 = smul.u32 %s32, 2
          %s259 = sadd.s32 %s258, %s33
          %s260 = smul.u32 4, %s259
          %s262 = ssub.s32 256, 256
          %263 = vsyncadd %s254, %s262
          %s264 = smul.addr %s260, 64
          %s265 = scalar_lea.hbm %s0, %s264
          %s266 = sshll.u32 %s257, 4
          %s267 = int_to_ptr.vmem [resolvable:$true] %s266
          %272 = dma.hbm_to_vmem [thread:$0]  %s265, 256, %s267, %s254, 64, 64, 4
        $region28: #{tpu_custom_call.1} parent=23 // pred_fallthru
          _
        // Predicated region
        $region29: #{tpu_custom_call.1} parent=23 // pred_check
          %p273 = pneg %p91
        $region30: #{tpu_custom_call.1} parent=23 // pred_check_branch
          %275 = sbr.rel (%p273) target = $region32
        $region31: #{tpu_custom_call.1} parent=23 // pred_region
          %s276 = sand.u32 %s81, 1
          %s277 = scalar_lea.sflag [#allocation6], %s276
          %s278 = sand.u32 %s81, 1
          %s279 = smul.addr %s278, 8
          %s280 = scalar_lea.vmem [#allocation5], %s279
          %s281 = smul.u32 %s32, 2
          %s282 = sadd.s32 %s281, %s33
          %s284 = ssub.s32 128, 128
          %285 = vsyncadd %s277, %s284
          %s286 = smul.addr %s282, 128
          %s287 = scalar_lea.hbm %s1, %s286
          %s289 = sshll.u32 %s280, 4
          %s290 = int_to_ptr.vmem [resolvable:$true] %s289
          %292 = dma.hbm_to_vmem [thread:$0]  %s287, 128, %s290, %s277
        $region32: #{tpu_custom_call.1} parent=23 // pred_fallthru
          _
        // Predicated region
        $region33: #{tpu_custom_call.1} parent=23 // pred_check
          %p293 = pneg %p163
        $region34: #{tpu_custom_call.1} parent=23 // pred_check_branch
          %295 = sbr.rel (%p293) target = $region36
        $region35: #{tpu_custom_call.1} parent=23 // pred_region
          %s296 = smul.u32 %s32, 2
          %s297 = sadd.s32 %s296, %s33
          %s298 = smul.u32 4, %s297
          %p299 = scmp.lt.s32.totalorder %s298, 15
          %s300 = scalar_select %p299, %s298, 15
          %s301 = smul.addr %s300, 8
          %s302 = scalar_lea.vmem %s4, %s301
          %s303 = smul.u32 %s32, 2
          %s304 = sadd.s32 %s303, %s33
          %s305 = smul.u32 4, %s304
        $region36: #{tpu_custom_call.1} parent=23 // pred_fallthru
          _
      $region24: #{tpu_custom_call.1} parent=5 // pred_fallthru
        _
      %p306 = scmp.le.s32.totalorder 1, %s25
      %p307 = scmp.lt.s32.totalorder %s25, 5
      %p308 = pnand %p306, %p307
      %p309 = pneg %p308
      // Predicated region
      $region37: #{tpu_custom_call.1} parent=5 // pred_check
        _
      $region38: #{tpu_custom_call.1} parent=5 // pred_check_branch
        %311 = sbr.rel (%p308) target = $region40
      $region39: #{tpu_custom_call.1} parent=5 // pred_region
        %s312 = ssub.s32 %s25, 1
        %s313 = sand.u32 %s54, 1
        %s314 = scalar_lea.sflag [#allocation3], %s313
        %s315 = sand.u32 %s54, 1
        %s316 = smul.addr %s315, 16
        %s317 = scalar_lea.vmem [#allocation2], %s316
        // Predicated region
        $region41: #{tpu_custom_call.1} parent=39 // pred_check
          %p318 = pneg %p67
        $region42: #{tpu_custom_call.1} parent=39 // pred_check_branch
          %320 = sbr.rel (%p318) target = $region44
        $region43: #{tpu_custom_call.1} parent=39 // pred_region
          %321 = dma.done %s314, 256
        $region44: #{tpu_custom_call.1} parent=39 // pred_fallthru
          _
        %s322 = sand.u32 %s84, 1
        %s323 = scalar_lea.sflag [#allocation6], %s322
        %s324 = sand.u32 %s84, 1
        %s325 = smul.addr %s324, 8
        %s326 = scalar_lea.vmem [#allocation5], %s325
        // Predicated region
        $region45: #{tpu_custom_call.1} parent=39 // pred_check
          %p327 = pneg %p97
        $region46: #{tpu_custom_call.1} parent=39 // pred_check_branch
          %329 = sbr.rel (%p327) target = $region48
        $region47: #{tpu_custom_call.1} parent=39 // pred_region
          %330 = dma.done %s323, 128
        $region48: #{tpu_custom_call.1} parent=39 // pred_fallthru
          _
        %s331 = sand.u32 %s54, 1
        %s332 = scalar_lea.sflag [#allocation3], %s331
        %s333 = sand.u32 %s54, 1
        %s334 = smul.addr %s333, 16
        %s335 = scalar_lea.vmem [#allocation2], %s334
        %p336 = pneg %p67
        %p337 = pneg %p64
        %s338 = sand.u32 %s84, 1
        %s339 = scalar_lea.sflag [#allocation6], %s338
        %s340 = sand.u32 %s84, 1
        %s341 = smul.addr %s340, 8
        %s342 = scalar_lea.vmem [#allocation5], %s341
        %p343 = pneg %p97
        %p344 = pneg %p94
        %p345 = pneg %p118
        %p346 = pneg %p115
        %p347 = pneg %p139
        %p348 = pneg %p136
        %s349 = smul.u32 %s34, 2
        %s350 = sadd.s32 %s349, %s35
        %s351 = smul.u32 4, %s350
        %p352 = scmp.lt.s32.totalorder %s351, 15
        %s353 = scalar_select %p352, %s351, 15
        %s354 = smul.addr %s353, 8
        %s355 = scalar_lea.vmem %s4, %s354
        %p356 = pneg %p169
        %p357 = pneg %p166
        %p358 = pneg %p195
        %p359 = pneg %p192
        %s360 = sand.u32 %s182, 1
        %s361 = scalar_lea.sflag [#allocation4], %s360
        %s362 = sand.u32 %s182, 1
        %s363 = smul.addr %s362, 128
        %s364 = scalar_lea.vmem [#allocation7], %s363
        %p365 = pneg %p225
        %p366 = pneg %p222
        %s367 = sand.u32 %s212, 1
        %s368 = scalar_lea.sflag [#allocation9], %s367
        %s369 = sand.u32 %s212, 1
        %s370 = smul.addr %s369, 16
        %s371 = scalar_lea.vmem [#allocation8], %s370
        %s372 = smul.u32 %s34, 2
        %s373 = sadd.s32 %s372, %s35
        %s374 = smul.u32 4, %s373
        %s375 = smul.u32 %s34, 2
        %s376 = sadd.s32 %s375, %s35
        %s377 = smul.u32 %s34, 2
        %s378 = sadd.s32 %s377, %s35
        %s379 = smul.u32 4, %s378
        %p380 = scmp.lt.s32.totalorder %s379, 15
        %s381 = scalar_select %p380, %s379, 15
        %s382 = smul.addr %s381, 8
        %s383 = scalar_lea.vmem %s4, %s382
        %s384 = smul.u32 %s34, 2
        %s385 = sadd.s32 %s384, %s35
        %s386 = smul.u32 4, %s385
        %s387 = smul.u32 16, %s34
        %s388 = smul.u32 %s34, 2
        %s389 = sadd.s32 %s388, %s35
        %s390 = smul.u32 4, %s389
        %p392 = scmp.eq.s32.totalorder %s35, 0
        // Predicated region
        $region49: #{tpu_custom_call.1} parent=39 // pred_check
          %p393 = pneg %p392
        $region50: #{tpu_custom_call.1} parent=39 // pred_check_branch
          %395 = sbr.rel (%p393) target = $region52
        $region51: #{tpu_custom_call.1} parent=39 // pred_region
          %396 = vst [vmem:[%s364] sm:$0xff] 0.0
          %397 = vst [vmem:[%s364 + $0x8] sm:$0xff] 0.0
          %398 = vst [vmem:[%s364 + $0x10] sm:$0xff] 0.0
          %399 = vst [vmem:[%s364 + $0x18] sm:$0xff] 0.0
          %400 = vst [vmem:[%s364 + $0x20] sm:$0xff] 0.0
          %401 = vst [vmem:[%s364 + $0x28] sm:$0xff] 0.0
          %402 = vst [vmem:[%s364 + $0x30] sm:$0xff] 0.0
          %403 = vst [vmem:[%s364 + $0x38] sm:$0xff] 0.0
          %404 = vst [vmem:[%s364 + $0x40] sm:$0xff] 0.0
          %405 = vst [vmem:[%s364 + $0x48] sm:$0xff] 0.0
          %406 = vst [vmem:[%s364 + $0x50] sm:$0xff] 0.0
          %407 = vst [vmem:[%s364 + $0x58] sm:$0xff] 0.0
          %408 = vst [vmem:[%s364 + $0x60] sm:$0xff] 0.0
          %409 = vst [vmem:[%s364 + $0x68] sm:$0xff] 0.0
          %410 = vst [vmem:[%s364 + $0x70] sm:$0xff] 0.0
          %411 = vst [vmem:[%s364 + $0x78] sm:$0xff] 0.0
        $region52: #{tpu_custom_call.1} parent=39 // pred_fallthru
          _
        %v412 = vld [vmem:[%s317] sm:$0xf]
        %v413 = vld [vmem:[%s317 + $0x4] sm:$0xf]
        %v414 = vld [vmem:[%s317 + $0x8] sm:$0xf]
        %v415 = vld [vmem:[%s317 + $0xc] sm:$0xf]
        %v416 = vld [vmem:[%s2] sm:$0xff]
        %v417 = vld [vmem:[%s2 + $0x8] sm:$0xff]
        %v418 = vld [vmem:[%s2 + $0x10] sm:$0xff]
        %v419 = vld [vmem:[%s2 + $0x18] sm:$0xff]
        %v420 = vld [vmem:[%s2 + $0x20] sm:$0xff]
        %v421 = vld [vmem:[%s2 + $0x28] sm:$0xff]
        %v422 = vld [vmem:[%s2 + $0x30] sm:$0xff]
        %v423 = vld [vmem:[%s2 + $0x38] sm:$0xff]
        %v424 = vld [vmem:[%s2 + $0x40] sm:$0xff]
        %v425 = vld [vmem:[%s2 + $0x48] sm:$0xff]
        %v426 = vld [vmem:[%s2 + $0x50] sm:$0xff]
        %v427 = vld [vmem:[%s2 + $0x58] sm:$0xff]
        %v428 = vld [vmem:[%s2 + $0x60] sm:$0xff]
        %v429 = vld [vmem:[%s2 + $0x68] sm:$0xff]
        %v430 = vld [vmem:[%s2 + $0x70] sm:$0xff]
        %v431 = vld [vmem:[%s2 + $0x78] sm:$0xff]
        %v436 = vunpack.c.l.b16 %v412
        %v437 = vunpack.c.l.b16 %v413
        %v438 = vunpack.c.l.b16 %v414
        %v439 = vunpack.c.l.b16 %v415
        %v440 = vpack.c.b16 %v437, %v436
        %v441 = vpack.c.b16 %v439, %v438
        %v460 = vunpack.c.l.b16 %v416
        %v461 = vunpack.c.h.b16 %v416
        %v462 = vunpack.c.l.b16 %v417
        %v463 = vunpack.c.h.b16 %v417
        %v464 = vunpack.c.l.b16 %v418
        %v465 = vunpack.c.h.b16 %v418
        %v466 = vunpack.c.l.b16 %v419
        %v467 = vunpack.c.h.b16 %v419
        %v468 = vunpack.c.l.b16 %v420
        %v469 = vunpack.c.h.b16 %v420
        %v470 = vunpack.c.l.b16 %v421
        %v471 = vunpack.c.h.b16 %v421
        %v472 = vunpack.c.l.b16 %v422
        %v473 = vunpack.c.h.b16 %v422
        %v474 = vunpack.c.l.b16 %v423
        %v475 = vunpack.c.h.b16 %v423
        %v476 = vunpack.c.l.b16 %v424
        %v477 = vunpack.c.h.b16 %v424
        %v478 = vunpack.c.l.b16 %v425
        %v479 = vunpack.c.h.b16 %v425
        %v480 = vunpack.c.l.b16 %v426
        %v481 = vunpack.c.h.b16 %v426
        %v482 = vunpack.c.l.b16 %v427
        %v483 = vunpack.c.h.b16 %v427
        %v484 = vunpack.c.l.b16 %v428
        %v485 = vunpack.c.h.b16 %v428
        %v486 = vunpack.c.l.b16 %v429
        %v487 = vunpack.c.h.b16 %v429
        %v488 = vunpack.c.l.b16 %v430
        %v489 = vunpack.c.h.b16 %v430
        %v490 = vunpack.c.l.b16 %v431
        %v491 = vunpack.c.h.b16 %v431
        %v492 = vpack.c.b16 %v462, %v460
        %v493 = vpack.c.b16 %v463, %v461
        %v494 = vpack.c.b16 %v466, %v464
        %v495 = vpack.c.b16 %v467, %v465
        %v496 = vpack.c.b16 %v470, %v468
        %v497 = vpack.c.b16 %v471, %v469
        %v498 = vpack.c.b16 %v474, %v472
        %v499 = vpack.c.b16 %v475, %v473
        %v500 = vpack.c.b16 %v478, %v476
        %v501 = vpack.c.b16 %v479, %v477
        %v502 = vpack.c.b16 %v482, %v480
        %v503 = vpack.c.b16 %v483, %v481
        %v504 = vpack.c.b16 %v486, %v484
        %v505 = vpack.c.b16 %v487, %v485
        %v506 = vpack.c.b16 %v490, %v488
        %v507 = vpack.c.b16 %v491, %v489
        %524 = vmatprep.subr.bf16.mxu0 %v507
        %525 = vmatpush1.bf16.msra.mxu0 %v506
        %526 = vmatprep.subr.bf16.mxu0 %v505
        %527 = vmatpush1.bf16.msra.mxu0 %v504
        %528 = vmatprep.subr.bf16.mxu0 %v503
        %529 = vmatpush1.bf16.msra.mxu0 %v502
        %530 = vmatprep.subr.bf16.mxu0 %v501
        %531 = vmatpush1.bf16.msra.mxu0 %v500
        %532 = vmatprep.subr.bf16.mxu0 %v499
        %533 = vmatpush1.bf16.msra.mxu0 %v498
        %534 = vmatprep.subr.bf16.mxu0 %v497
        %535 = vmatpush1.bf16.msra.mxu0 %v496
        %536 = vmatprep.subr.bf16.mxu0 %v495
        %537 = vmatpush1.bf16.msra.mxu0 %v494
        %538 = vmatprep.subr.bf16.mxu0 %v493
        %539 = vmatpush1.bf16.msra.mxu0 %v492
        %540 = vmatprep.subr.bf16.mxu0 0
        %541 = vmatpush2.bf16.msra.mxu0 0
        %542 = vmatprep.subr.bf16.mxu0 0
        %543 = vmatpush2.bf16.msra.mxu0 0
        %544 = vmatprep.subr.bf16.mxu0 0
        %545 = vmatpush2.bf16.msra.mxu0 0
        %546 = vmatprep.subr.bf16.mxu0 0
        %547 = vmatpush2.bf16.msra.mxu0 0
        %548 = vmatprep.subr.bf16.mxu0 0
        %549 = vmatpush2.bf16.msra.mxu0 0
        %550 = vmatprep.subr.bf16.mxu0 0
        %551 = vmatpush2.bf16.msra.mxu0 0
        %552 = vmatprep.subr.bf16.mxu0 0
        %553 = vmatpush2.bf16.msra.mxu0 0
        %554 = vmatprep.subr.bf16.mxu0 0
        %555 = vmatpush2.bf16.msra.mxu0 0
        %556 = vmatprep.mubr.bf16.mxu0 0
        %557 = vmatmul.mubr.bf16.gmra.mxu0 %v440
        %v558 = vpop.f32.mrf.mxu0
        %v559 = vadd.f32 0.0, %v558
        %v560 = vpop.f32.mrf.mxu0
        %v561 = vadd.f32 0.0, %v560
        %v562 = vpop.f32.mrf.mxu0
        %v563 = vadd.f32 0.0, %v562
        %v564 = vpop.f32.mrf.mxu0
        %v565 = vadd.f32 0.0, %v564
        %566 = vmatprep.mubr.bf16.mxu0 0
        %567 = vmatmul.mubr.bf16.gmra.mxu0 %v441
        %v568 = vpop.f32.mrf.mxu0
        %v569 = vadd.f32 0.0, %v568
        %v570 = vpop.f32.mrf.mxu0
        %v571 = vadd.f32 0.0, %v570
        %v572 = vpop.f32.mrf.mxu0
        %v573 = vadd.f32 0.0, %v572
        %v574 = vpop.f32.mrf.mxu0
        %v575 = vadd.f32 0.0, %v574
        %576 = vdwg.mxu0
        %v577 = vld [vmem:[%s3] sm:$0x1]
        %v579 = vlaneseq
        %v580 = vshrl.u32 %v579, 7
        %v581 = vsub.s32 0, %v580
        %v582 = vrot.slane %v577, %v581
        %v584 = vadd.f32 %v561, %v582
        %v585 = vadd.f32 %v565, %v582
        %v586 = vadd.f32 %v571, %v582
        %v587 = vadd.f32 %v575, %v582
        %v588 = vpack.c.bf16 %v585, %v584
        %v589 = vpack.c.bf16 %v587, %v586
        %v592 = vunpack.c.l.b16 %v588
        %v593 = vunpack.c.h.b16 %v588
        %v594 = vunpack.c.l.b16 %v589
        %v595 = vunpack.c.h.b16 %v589
        %v596 = vpack.c.b16 %v592, %v592
        %v597 = vpack.c.b16 %v593, %v593
        %v598 = vpack.c.b16 %v594, %v594
        %v599 = vpack.c.b16 %v595, %v595
        %604 = vst [vmem:[%s371] sm:$0xf] %v596
        %605 = vst [vmem:[%s371 + $0x4] sm:$0xf] %v597
        %606 = vst [vmem:[%s371 + $0x8] sm:$0xf] %v598
        %607 = vst [vmem:[%s371 + $0xc] sm:$0xf] %v599
        %v608 = vld [vmem:[%s383] sm:$0xff]
        %v609 = vld [vmem:[%s383 + $0x8] sm:$0xff]
        %v610 = vld [vmem:[%s383 + $0x10] sm:$0xff]
        %v611 = vld [vmem:[%s383 + $0x18] sm:$0xff]
        %613 = vset.pattern.permute.xlu0 0
        %614 = vperm.xlu0 %613, %v608
        %v615 = vpop.permute.xlu0 %614
        %618 = vset.pattern.permute.xlu0 0
        %619 = vperm.xlu0 %618, %v609
        %v620 = vpop.permute.xlu0 %619
        %623 = vset.pattern.permute.xlu0 0
        %624 = vperm.xlu0 %623, %v610
        %v625 = vpop.permute.xlu0 %624
        %628 = vset.pattern.permute.xlu0 0
        %629 = vperm.xlu0 %628, %v611
        %v630 = vpop.permute.xlu0 %629
        %v632 = vmul.f32 %v559, %v615
        %v633 = vmul.f32 %v563, %v620
        %v634 = vmul.f32 %v569, %v625
        %v635 = vmul.f32 %v573, %v630
        %v636 = vpack.c.bf16 %v633, %v632
        %v637 = vpack.c.bf16 %v635, %v634
        %v638 = vld [vmem:[%s326] sm:$0xff]
        %v639 = vunpack.c.l.s8.bf16 %v638
        %v640 = vunpack.c.h.s8.bf16 %v638
        %v641 = vld [vmem:[%s364] sm:$0xff]
        %v642 = vld [vmem:[%s364 + $0x8] sm:$0xff]
        %v643 = vld [vmem:[%s364 + $0x10] sm:$0xff]
        %v644 = vld [vmem:[%s364 + $0x18] sm:$0xff]
        %v645 = vld [vmem:[%s364 + $0x20] sm:$0xff]
        %v646 = vld [vmem:[%s364 + $0x28] sm:$0xff]
        %v647 = vld [vmem:[%s364 + $0x30] sm:$0xff]
        %v648 = vld [vmem:[%s364 + $0x38] sm:$0xff]
        %v649 = vld [vmem:[%s364 + $0x40] sm:$0xff]
        %v650 = vld [vmem:[%s364 + $0x48] sm:$0xff]
        %v651 = vld [vmem:[%s364 + $0x50] sm:$0xff]
        %v652 = vld [vmem:[%s364 + $0x58] sm:$0xff]
        %v653 = vld [vmem:[%s364 + $0x60] sm:$0xff]
        %v654 = vld [vmem:[%s364 + $0x68] sm:$0xff]
        %v655 = vld [vmem:[%s364 + $0x70] sm:$0xff]
        %v656 = vld [vmem:[%s364 + $0x78] sm:$0xff]
        %657 = vxpose.xlu0.c.b16.start [1/8] %v639, 128
        %658 = vxpose.xlu0.c.b16.cont [2/8] %v640, 128
        %659 = vxpose.xlu0.c.b16.cont [3/8] 0, 128
        %660 = vxpose.xlu0.c.b16.cont [4/8] 0, 128
        %661 = vxpose.xlu0.c.b16.cont [5/8] 0, 128
        %662 = vxpose.xlu0.c.b16.cont [6/8] 0, 128
        %663 = vxpose.xlu0.c.b16.cont [7/8] 0, 128
        %664 = vxpose.xlu0.c.b16.end [8/8] 0, 128
        %v665 = vpop.trf.xlu0
        %v666 = vpop.trf.xlu0
        %v667 = vpop.trf.xlu0
        %v668 = vpop.trf.xlu0
        %v669 = vpop.trf.xlu0
        %v670 = vpop.trf.xlu0
        %v671 = vpop.trf.xlu0
        %v672 = vpop.trf.xlu0
        %vm673 = vcmask 261120
        %v675 = vsel %vm673, %v665, 0
        %v678 = vsel %vm673, %v666, 0
        %v681 = vsel %vm673, %v667, 0
        %v684 = vsel %vm673, %v668, 0
        %v687 = vsel %vm673, %v669, 0
        %v690 = vsel %vm673, %v670, 0
        %v693 = vsel %vm673, %v671, 0
        %v696 = vsel %vm673, %v672, 0
        %698 = vmatprep.subr.bf16.mxu0 0
        %699 = vmatpush1.bf16.msra.mxu0 0
        %700 = vmatprep.subr.bf16.mxu0 0
        %701 = vmatpush1.bf16.msra.mxu0 0
        %702 = vmatprep.subr.bf16.mxu0 0
        %703 = vmatpush1.bf16.msra.mxu0 0
        %704 = vmatprep.subr.bf16.mxu0 0
        %705 = vmatpush1.bf16.msra.mxu0 0
        %706 = vmatprep.subr.bf16.mxu0 0
        %707 = vmatpush1.bf16.msra.mxu0 0
        %708 = vmatprep.subr.bf16.mxu0 0
        %709 = vmatpush1.bf16.msra.mxu0 0
        %710 = vmatprep.subr.bf16.mxu0 0
        %711 = vmatpush1.bf16.msra.mxu0 %v637
        %712 = vmatprep.subr.bf16.mxu0 0
        %713 = vmatpush1.bf16.msra.mxu0 %v636
        %714 = vmatprep.subr.bf16.mxu0 0
        %715 = vmatpush2.bf16.msra.mxu0 0
        %716 = vmatprep.subr.bf16.mxu0 0
        %717 = vmatpush2.bf16.msra.mxu0 0
        %718 = vmatprep.subr.bf16.mxu0 0
        %719 = vmatpush2.bf16.msra.mxu0 0
        %720 = vmatprep.subr.bf16.mxu0 0
        %721 = vmatpush2.bf16.msra.mxu0 0
        %722 = vmatprep.subr.bf16.mxu0 0
        %723 = vmatpush2.bf16.msra.mxu0 0
        %724 = vmatprep.subr.bf16.mxu0 0
        %725 = vmatpush2.bf16.msra.mxu0 0
        %726 = vmatprep.subr.bf16.mxu0 0
        %727 = vmatpush2.bf16.msra.mxu0 0
        %728 = vmatprep.subr.bf16.mxu0 0
        %729 = vmatpush2.bf16.msra.mxu0 0
        %730 = vmatprep.mubr.bf16.mxu0 0
        %731 = vmatmul.mubr.bf16.gmra.mxu0 %v675
        %v732 = vpop.f32.mrf.mxu0
        %v733 = vadd.f32 0.0, %v732
        %v734 = vpop.f32.mrf.mxu0
        %v735 = vpop.f32.mrf.mxu0
        %v736 = vadd.f32 0.0, %v735
        %v737 = vpop.f32.mrf.mxu0
        %738 = vmatprep.mubr.bf16.mxu0 0
        %739 = vmatmul.mubr.bf16.gmra.mxu0 %v678
        %v740 = vpop.f32.mrf.mxu0
        %v741 = vadd.f32 0.0, %v740
        %v742 = vpop.f32.mrf.mxu0
        %v743 = vpop.f32.mrf.mxu0
        %v744 = vadd.f32 0.0, %v743
        %v745 = vpop.f32.mrf.mxu0
        %746 = vmatprep.mubr.bf16.mxu0 0
        %747 = vmatmul.mubr.bf16.gmra.mxu0 %v681
        %v748 = vpop.f32.mrf.mxu0
        %v749 = vadd.f32 0.0, %v748
        %v750 = vpop.f32.mrf.mxu0
        %v751 = vpop.f32.mrf.mxu0
        %v752 = vadd.f32 0.0, %v751
        %v753 = vpop.f32.mrf.mxu0
        %754 = vmatprep.mubr.bf16.mxu0 0
        %755 = vmatmul.mubr.bf16.gmra.mxu0 %v684
        %v756 = vpop.f32.mrf.mxu0
        %v757 = vadd.f32 0.0, %v756
        %v758 = vpop.f32.mrf.mxu0
        %v759 = vpop.f32.mrf.mxu0
        %v760 = vadd.f32 0.0, %v759
        %v761 = vpop.f32.mrf.mxu0
        %762 = vmatprep.mubr.bf16.mxu0 0
        %763 = vmatmul.mubr.bf16.gmra.mxu0 %v687
        %v764 = vpop.f32.mrf.mxu0
        %v765 = vadd.f32 0.0, %v764
        %v766 = vpop.f32.mrf.mxu0
        %v767 = vpop.f32.mrf.mxu0
        %v768 = vadd.f32 0.0, %v767
        %v769 = vpop.f32.mrf.mxu0
        %770 = vmatprep.mubr.bf16.mxu0 0
        %771 = vmatmul.mubr.bf16.gmra.mxu0 %v690
        %v772 = vpop.f32.mrf.mxu0
        %v773 = vadd.f32 0.0, %v772
        %v774 = vpop.f32.mrf.mxu0
        %v775 = vpop.f32.mrf.mxu0
        %v776 = vadd.f32 0.0, %v775
        %v777 = vpop.f32.mrf.mxu0
        %778 = vmatprep.mubr.bf16.mxu0 0
        %779 = vmatmul.mubr.bf16.gmra.mxu0 %v693
        %v780 = vpop.f32.mrf.mxu0
        %v781 = vadd.f32 0.0, %v780
        %v782 = vpop.f32.mrf.mxu0
        %v783 = vpop.f32.mrf.mxu0
        %v784 = vadd.f32 0.0, %v783
        %v785 = vpop.f32.mrf.mxu0
        %786 = vmatprep.mubr.bf16.mxu0 0
        %787 = vmatmul.mubr.bf16.gmra.mxu0 %v696
        %v788 = vpop.f32.mrf.mxu0
        %v789 = vadd.f32 0.0, %v788
        %v790 = vpop.f32.mrf.mxu0
        %v791 = vpop.f32.mrf.mxu0
        %v792 = vadd.f32 0.0, %v791
        %v793 = vpop.f32.mrf.mxu0
        %794 = vdwg.mxu0
        %v795 = vadd.f32 %v641, %v733
        %v796 = vadd.f32 %v642, %v736
        %v797 = vadd.f32 %v643, %v741
        %v798 = vadd.f32 %v644, %v744
        %v799 = vadd.f32 %v645, %v749
        %v800 = vadd.f32 %v646, %v752
        %v801 = vadd.f32 %v647, %v757
        %v802 = vadd.f32 %v648, %v760
        %v803 = vadd.f32 %v649, %v765
        %v804 = vadd.f32 %v650, %v768
        %v805 = vadd.f32 %v651, %v773
        %v806 = vadd.f32 %v652, %v776
        %v807 = vadd.f32 %v653, %v781
        %v808 = vadd.f32 %v654, %v784
        %v809 = vadd.f32 %v655, %v789
        %v810 = vadd.f32 %v656, %v792
        %811 = vst [vmem:[%s364] sm:$0xff] %v795
        %812 = vst [vmem:[%s364 + $0x8] sm:$0xff] %v796
        %813 = vst [vmem:[%s364 + $0x10] sm:$0xff] %v797
        %814 = vst [vmem:[%s364 + $0x18] sm:$0xff] %v798
        %815 = vst [vmem:[%s364 + $0x20] sm:$0xff] %v799
        %816 = vst [vmem:[%s364 + $0x28] sm:$0xff] %v800
        %817 = vst [vmem:[%s364 + $0x30] sm:$0xff] %v801
        %818 = vst [vmem:[%s364 + $0x38] sm:$0xff] %v802
        %819 = vst [vmem:[%s364 + $0x40] sm:$0xff] %v803
        %820 = vst [vmem:[%s364 + $0x48] sm:$0xff] %v804
        %821 = vst [vmem:[%s364 + $0x50] sm:$0xff] %v805
        %822 = vst [vmem:[%s364 + $0x58] sm:$0xff] %v806
        %823 = vst [vmem:[%s364 + $0x60] sm:$0xff] %v807
        %824 = vst [vmem:[%s364 + $0x68] sm:$0xff] %v808
        %825 = vst [vmem:[%s364 + $0x70] sm:$0xff] %v809
        %826 = vst [vmem:[%s364 + $0x78] sm:$0xff] %v810
        %s827 = sand.u32 %s182, 1
        %s828 = scalar_lea.sflag [#allocation4], %s827
        %s829 = sand.u32 %s182, 1
        %s830 = smul.addr %s829, 128
        %s831 = scalar_lea.vmem [#allocation7], %s830
        %s832 = sand.u32 %s212, 1
        %s833 = scalar_lea.sflag [#allocation9], %s832
        %s834 = sand.u32 %s212, 1
        %s835 = smul.addr %s834, 16
        %s836 = scalar_lea.vmem [#allocation8], %s835
        // Predicated region
        $region53: #{tpu_custom_call.1} parent=39 // pred_check
          %p837 = pneg %p192
        $region54: #{tpu_custom_call.1} parent=39 // pred_check_branch
          %839 = sbr.rel (%p837) target = $region56
        $region55: #{tpu_custom_call.1} parent=39 // pred_region
          %s840 = smul.u32 16, %s34
          %s842 = ssub.s32 2048, 2048
          %843 = vsyncadd %s828, %s842
          %s844 = smul.addr %s840, 128
          %s845 = scalar_lea.hbm %s5, %s844
          %s846 = sshll.u32 %s831, 4
          %s847 = int_to_ptr.vmem [resolvable:$true] %s846
          %852 = dma.vmem_to_hbm [thread:$0]  %s847, 2048, %s845, %s828, 128, 128, 8
        $region56: #{tpu_custom_call.1} parent=39 // pred_fallthru
          _
        // Predicated region
        $region57: #{tpu_custom_call.1} parent=39 // pred_check
          %p853 = pneg %p222
        $region58: #{tpu_custom_call.1} parent=39 // pred_check_branch
          %855 = sbr.rel (%p853) target = $region60
        $region59: #{tpu_custom_call.1} parent=39 // pred_region
          %s856 = smul.u32 %s34, 2
          %s857 = sadd.s32 %s856, %s35
          %s858 = smul.u32 4, %s857
          %s860 = ssub.s32 256, 256
          %861 = vsyncadd %s833, %s860
          %s862 = smul.addr %s858, 64
          %s863 = scalar_lea.hbm %s6, %s862
          %s864 = sshll.u32 %s836, 4
          %s865 = int_to_ptr.vmem [resolvable:$true] %s864
          %870 = dma.vmem_to_hbm [thread:$0]  %s865, 256, %s863, %s833, 64, 64, 4
        $region60: #{tpu_custom_call.1} parent=39 // pred_fallthru
          _
      $region40: #{tpu_custom_call.1} parent=5 // pred_fallthru
        _
      %p871 = scmp.le.s32.totalorder 2, %s25
      // Predicated region
      $region61: #{tpu_custom_call.1} parent=5 // pred_check
        %p872 = pneg %p871
      $region62: #{tpu_custom_call.1} parent=5 // pred_check_branch
        %874 = sbr.rel (%p872) target = $region64
      $region63: #{tpu_custom_call.1} parent=5 // pred_region
        %s875 = ssub.s32 %s25, 2
        // Predicated region
        $region65: #{tpu_custom_call.1} parent=63 // pred_check
          %p876 = pneg %p198
        $region66: #{tpu_custom_call.1} parent=63 // pred_check_branch
          %878 = sbr.rel (%p876) target = $region68
        $region67: #{tpu_custom_call.1} parent=63 // pred_region
          %s879 = sand.u32 %s183, 1
          %s880 = scalar_lea.sflag [#allocation4], %s879
          %s881 = sand.u32 %s183, 1
          %s882 = smul.addr %s881, 128
          %s883 = scalar_lea.vmem [#allocation7], %s882
          %884 = dma.done %s880, 2048
        $region68: #{tpu_custom_call.1} parent=63 // pred_fallthru
          _
        // Predicated region
        $region69: #{tpu_custom_call.1} parent=63 // pred_check
          %p885 = pneg %p228
        $region70: #{tpu_custom_call.1} parent=63 // pred_check_branch
          %887 = sbr.rel (%p885) target = $region72
        $region71: #{tpu_custom_call.1} parent=63 // pred_region
          %s888 = sand.u32 %s213, 1
          %s889 = scalar_lea.sflag [#allocation9], %s888
          %s890 = sand.u32 %s213, 1
          %s891 = smul.addr %s890, 16
          %s892 = scalar_lea.vmem [#allocation8], %s891
          %893 = dma.done %s889, 256
        $region72: #{tpu_custom_call.1} parent=63 // pred_fallthru
          _
      $region64: #{tpu_custom_call.1} parent=5 // pred_fallthru
        _
    $region6: #{tpu_custom_call.1} parent=1 // loop_footer
      %s29 = sadd.s32 1, %s25
    $region7: #{tpu_custom_call.1} parent=1 // loop_footer_branch
      %24 = sbr.rel target = $region3
    $region8: #{tpu_custom_call.1} parent=1 // loop_exit
      _
    %894 = vsyncpa [#allocation3], 1
    %s895 = scalar_lea.sflag [#allocation3], 1
    %896 = vsyncpa %s895, 1
    %897 = vsyncpa [#allocation6], 1
    %s898 = scalar_lea.sflag [#allocation6], 1
    %899 = vsyncpa %s898, 1
    %900 = vsyncpa [#allocation4], 1
    %s901 = scalar_lea.sflag [#allocation4], 1
    %902 = vsyncpa %s901, 1
    %903 = vsyncpa [#allocation9], 1
    %s904 = scalar_lea.sflag [#allocation9], 1
    %905 = vsyncpa %s904, 1

// kernel: tpu_custom_call.1
$region0: #{tpu_custom_call.1}
  #allocation0 [shape = 'u32[]', space=smem, size = 0x4, offset = 0x4, fixed_abs, tag = 'smem constant byte address 0x4 - core index']
  #allocation1 [shape = 'u32[144,128]{1,0:T(1,128)}', space=vmem, size = 0x12000, scoped, tag = 'internal scratch']
  %s0 = inlined_call_operand.hbm [shape: bf16[128,128], index: 0, kind: input, shape index: {}]
  %s1 = inlined_call_operand.hbm [shape: s8[128,128], index: 1, kind: input, shape index: {}]
  %s2 = inlined_call_operand.vmem [shape: bf16[128,256], index: 2, kind: input, shape index: {}]
  %s3 = inlined_call_operand.vmem [shape: f32[1,128], index: 3, kind: input, shape index: {}]
  %s4 = inlined_call_operand.vmem [shape: f32[128,1], index: 4, kind: input, shape index: {}]
  %s5 = inlined_call_operand.hbm [shape: f32[256,128], index: 5, kind: output, shape index: {0}]
  %s6 = inlined_call_operand.hbm [shape: bf16[128,128], index: 6, kind: output, shape index: {1}]
  %7 = xla_tuple %s5, %s6
  %s8 = sld [smem:[#allocation0]]
  $region73: #{tpu_custom_call.1} parent=0
    _
  %s10 = ssub.s32 1, %s8
  %s11 = scalar_select 0, %s10, %s8
  $region1: #{tpu_custom_call.1} parent=0
    #allocation2 [shape = 'u8[16384]{0}', space=vmem, size = 0x4000, scoped, tag = 'input window, operand 0']
    #allocation3 [shape = 's32[2]{0}', space=sflag, size = 0x8, scoped, tag = 'scoped memory for tpu_custom_call.1']
    #allocation4 [shape = 's32[2]{0}', space=sflag, size = 0x8, scoped, tag = 'scoped memory for tpu_custom_call.1']
    #allocation5 [shape = 'u8[8192]{0}', space=vmem, size = 0x2000, scoped, tag = 'input window, operand 1']
    #allocation6 [shape = 's32[2]{0}', space=sflag, size = 0x8, scoped, tag = 'scoped memory for tpu_custom_call.1']
    #allocation7 [shape = 'u8[131072]{0}', space=vmem, size = 0x20000, scoped, tag = 'output window, operand 0']
    #allocation8 [shape = 'u8[16384]{0}', space=vmem, size = 0x4000, scoped, tag = 'output window, operand 1']
    #allocation9 [shape = 's32[2]{0}', space=sflag, size = 0x8, scoped, tag = 'scoped memory for tpu_custom_call.1']
    %12 = vsyncpa [#allocation3], 0
    %s13 = scalar_lea.sflag [#allocation3], 1
    %14 = vsyncpa %s13, 0
    %15 = vsyncpa [#allocation6], 0
    %s16 = scalar_lea.sflag [#allocation6], 1
    %17 = vsyncpa %s16, 0
    %18 = vsyncpa [#allocation4], 0
    %s19 = scalar_lea.sflag [#allocation4], 1
    %20 = vsyncpa %s19, 0
    %21 = vsyncpa [#allocation9], 0
    %s22 = scalar_lea.sflag [#allocation9], 1
    %23 = vsyncpa %s22, 0
    loop: start=0, step=1, limit=6
    $region2: #{tpu_custom_call.1} parent=1 // loop_pre_header
      _
    $region3: #{tpu_custom_call.1} parent=1 // loop_header
      %s25 = sphi 0, %s29
      %p26 = scmp.ge.s32.totalorder %s25, 6
      %s32 = sphi 0, %s44
      %s33 = sphi 0, %s40
      %s34 = sphi 0, %s32
      %s35 = sphi 0, %s33
      %s36 = sphi 0, %s34
      %s37 = sphi 0, %s35
      %s51 = sphi 0, %s53
      %s54 = sphi 0, %s51
      %s55 = sphi 0, %s54
      %s71 = sphi 0, %s55
      %s81 = sphi 0, %s83
      %s84 = sphi 0, %s81
      %s85 = sphi 0, %s84
      %s101 = sphi 0, %s85
      %s105 = sphi 0, %s105
      %s107 = sphi 0, %s105
      %s108 = sphi 0, %s107
      %s122 = sphi 0, %s108
      %s126 = sphi 0, %s126
      %s128 = sphi 0, %s126
      %s129 = sphi 0, %s128
      %s143 = sphi 0, %s129
      %s153 = sphi 0, %s155
      %s156 = sphi 0, %s153
      %s157 = sphi 0, %s156
      %s173 = sphi 0, %s157
      %s179 = sphi 0, %s181
      %s182 = sphi 0, %s179
      %s183 = sphi 0, %s182
      %s199 = sphi 0, %s183
      %s209 = sphi 0, %s211
      %s212 = sphi 0, %s209
      %s213 = sphi 0, %s212
      %s229 = sphi 0, %s213
    $region4: #{tpu_custom_call.1} parent=1 // loop_header_branch
      %28 = sbr.rel (%p26) target = $region8
    $region5: #{tpu_custom_call.1} parent=1 // loop_body
      %s30 = ssub.s32 %s25, 1
      %s31 = ssub.s32 %s25, 2
      %s38 = sadd.s32 1, %s33
      %p39 = scmp.ge.s32.totalorder %s38, 2
      %s40 = scalar_select %p39, 0, %s38
      %s41 = sadd.s32 1, %s32
      %s42 = scalar_select %p39, %s41, %s32
      %p43 = scmp.ge.s32.totalorder %s42, 2
      %s44 = scalar_select %p43, 0, %s42
      %s45 = smul.u32 %s32, 2
      %s46 = sadd.s32 %s45, %s33
      %s47 = smul.u32 %s44, 2
      %s48 = sadd.s32 %s47, %s40
      %s49 = ssub.s32 %s46, %s48
      %p50 = scmp.eq.s32.totalorder %s49, 0
      %s52 = sadd.s32 %s51, 1
      %s53 = scalar_select %p50, %s51, %s52
      %p56 = pneg %p50
      %p57 = scmp.eq.s32.totalorder %s25, 3
      %p58 = por %p56, %p57
      %p59 = scmp.ne.s32.totalorder %s51, %s54
      %p60 = scmp.eq.s32.totalorder %s25, 0
      %p61 = por %p59, %p60
      %p62 = scmp.ne.s32.totalorder %s51, %s54
      %p63 = scmp.eq.s32.totalorder %s30, 3
      %p64 = por %p62, %p63
      %p65 = scmp.ne.s32.totalorder %s54, %s55
      %p66 = scmp.eq.s32.totalorder %s30, 0
      %p67 = por %p65, %p66
      %p68 = scmp.ne.s32.totalorder %s54, %s55
      %p69 = scmp.eq.s32.totalorder %s31, 3
      %p70 = por %p68, %p69
      %p72 = scmp.ne.s32.totalorder %s55, %s71
      %p73 = scmp.eq.s32.totalorder %s31, 0
      %p74 = por %p72, %p73
      %s75 = smul.u32 %s32, 2
      %s76 = sadd.s32 %s75, %s33
      %s77 = smul.u32 %s44, 2
      %s78 = sadd.s32 %s77, %s40
      %s79 = ssub.s32 %s76, %s78
      %p80 = scmp.eq.s32.totalorder %s79, 0
      %s82 = sadd.s32 %s81, 1
      %s83 = scalar_select %p80, %s81, %s82
      %p86 = pneg %p80
      %p87 = scmp.eq.s32.totalorder %s25, 3
      %p88 = por %p86, %p87
      %p89 = scmp.ne.s32.totalorder %s81, %s84
      %p90 = scmp.eq.s32.totalorder %s25, 0
      %p91 = por %p89, %p90
      %p92 = scmp.ne.s32.totalorder %s81, %s84
      %p93 = scmp.eq.s32.totalorder %s30, 3
      %p94 = por %p92, %p93
      %p95 = scmp.ne.s32.totalorder %s84, %s85
      %p96 = scmp.eq.s32.totalorder %s30, 0
      %p97 = por %p95, %p96
      %p98 = scmp.ne.s32.totalorder %s84, %s85
      %p99 = scmp.eq.s32.totalorder %s31, 3
      %p100 = por %p98, %p99
      %p102 = scmp.ne.s32.totalorder %s85, %s101
      %p103 = scmp.eq.s32.totalorder %s31, 0
      %p104 = por %p102, %p103
      %s106 = sadd.s32 %s105, 1
      %p109 = scmp.eq.s32.totalorder %s25, 3
      %p110 = scmp.ne.s32.totalorder %s105, %s107
      %p111 = scmp.eq.s32.totalorder %s25, 0
      %p112 = por %p110, %p111
      %p113 = scmp.ne.s32.totalorder %s105, %s107
      %p114 = scmp.eq.s32.totalorder %s30, 3
      %p115 = por %p113, %p114
      %p116 = scmp.ne.s32.totalorder %s107, %s108
      %p117 = scmp.eq.s32.totalorder %s30, 0
      %p118 = por %p116, %p117
      %p119 = scmp.ne.s32.totalorder %s107, %s108
      %p120 = scmp.eq.s32.totalorder %s31, 3
      %p121 = por %p119, %p120
      %p123 = scmp.ne.s32.totalorder %s108, %s122
      %p124 = scmp.eq.s32.totalorder %s31, 0
      %p125 = por %p123, %p124
      %s127 = sadd.s32 %s126, 1
      %p130 = scmp.eq.s32.totalorder %s25, 3
      %p131 = scmp.ne.s32.totalorder %s126, %s128
      %p132 = scmp.eq.s32.totalorder %s25, 0
      %p133 = por %p131, %p132
      %p134 = scmp.ne.s32.totalorder %s126, %s128
      %p135 = scmp.eq.s32.totalorder %s30, 3
      %p136 = por %p134, %p135
      %p137 = scmp.ne.s32.totalorder %s128, %s129
      %p138 = scmp.eq.s32.totalorder %s30, 0
      %p139 = por %p137, %p138
      %p140 = scmp.ne.s32.totalorder %s128, %s129
      %p141 = scmp.eq.s32.totalorder %s31, 3
      %p142 = por %p140, %p141
      %p144 = scmp.ne.s32.totalorder %s129, %s143
      %p145 = scmp.eq.s32.totalorder %s31, 0
      %p146 = por %p144, %p145
      %s147 = smul.u32 %s32, 2
      %s148 = sadd.s32 %s147, %s33
      %s149 = smul.u32 %s44, 2
      %s150 = sadd.s32 %s149, %s40
      %s151 = ssub.s32 %s148, %s150
      %p152 = scmp.eq.s32.totalorder %s151, 0
      %s154 = sadd.s32 %s153, 1
      %s155 = scalar_select %p152, %s153, %s154
      %p158 = pneg %p152
      %p159 = scmp.eq.s32.totalorder %s25, 3
      %p160 = por %p158, %p159
      %p161 = scmp.ne.s32.totalorder %s153, %s156
      %p162 = scmp.eq.s32.totalorder %s25, 0
      %p163 = por %p161, %p162
      %p164 = scmp.ne.s32.totalorder %s153, %s156
      %p165 = scmp.eq.s32.totalorder %s30, 3
      %p166 = por %p164, %p165
      %p167 = scmp.ne.s32.totalorder %s156, %s157
      %p168 = scmp.eq.s32.totalorder %s30, 0
      %p169 = por %p167, %p168
      %p170 = scmp.ne.s32.totalorder %s156, %s157
      %p171 = scmp.eq.s32.totalorder %s31, 3
      %p172 = por %p170, %p171
      %p174 = scmp.ne.s32.totalorder %s157, %s173
      %p175 = scmp.eq.s32.totalorder %s31, 0
      %p176 = por %p174, %p175
      %s177 = ssub.s32 %s32, %s44
      %p178 = scmp.eq.s32.totalorder %s177, 0
      %s180 = sadd.s32 %s179, 1
      %s181 = scalar_select %p178, %s179, %s180
      %p184 = pneg %p178
      %p185 = scmp.eq.s32.totalorder %s25, 3
      %p186 = por %p184, %p185
      %p187 = scmp.ne.s32.totalorder %s179, %s182
      %p188 = scmp.eq.s32.totalorder %s25, 0
      %p189 = por %p187, %p188
      %p190 = scmp.ne.s32.totalorder %s179, %s182
      %p191 = scmp.eq.s32.totalorder %s30, 3
      %p192 = por %p190, %p191
      %p193 = scmp.ne.s32.totalorder %s182, %s183
      %p194 = scmp.eq.s32.totalorder %s30, 0
      %p195 = por %p193, %p194
      %p196 = scmp.ne.s32.totalorder %s182, %s183
      %p197 = scmp.eq.s32.totalorder %s31, 3
      %p198 = por %p196, %p197
      %p200 = scmp.ne.s32.totalorder %s183, %s199
      %p201 = scmp.eq.s32.totalorder %s31, 0
      %p202 = por %p200, %p201
      %s203 = smul.u32 %s32, 2
      %s204 = sadd.s32 %s203, %s33
      %s205 = smul.u32 %s44, 2
      %s206 = sadd.s32 %s205, %s40
      %s207 = ssub.s32 %s204, %s206
      %p208 = scmp.eq.s32.totalorder %s207, 0
      %s210 = sadd.s32 %s209, 1
      %s211 = scalar_select %p208, %s209, %s210
      %p214 = pneg %p208
      %p215 = scmp.eq.s32.totalorder %s25, 3
      %p216 = por %p214, %p215
      %p217 = scmp.ne.s32.totalorder %s209, %s212
      %p218 = scmp.eq.s32.totalorder %s25, 0
      %p219 = por %p217, %p218
      %p220 = scmp.ne.s32.totalorder %s209, %s212
      %p221 = scmp.eq.s32.totalorder %s30, 3
      %p222 = por %p220, %p221
      %p223 = scmp.ne.s32.totalorder %s212, %s213
      %p224 = scmp.eq.s32.totalorder %s30, 0
      %p225 = por %p223, %p224
      %p226 = scmp.ne.s32.totalorder %s212, %s213
      %p227 = scmp.eq.s32.totalorder %s31, 3
      %p228 = por %p226, %p227
      %p230 = scmp.ne.s32.totalorder %s213, %s229
      %p231 = scmp.eq.s32.totalorder %s31, 0
      %p232 = por %p230, %p231
      %p233 = scmp.le.s32.totalorder 1, %s25
      %p234 = scmp.lt.s32.totalorder %s25, 5
      %p235 = pnand %p233, %p234
      %p236 = pneg %p235
      // Predicated region
      $region9: #{tpu_custom_call.1} parent=5 // pred_check
        _
      $region10: #{tpu_custom_call.1} parent=5 // pred_check_branch
        %238 = sbr.rel (%p235) target = $region12
      $region11: #{tpu_custom_call.1} parent=5 // pred_region
        %s239 = ssub.s32 %s25, 1
        // Predicated region
        $region13: #{tpu_custom_call.1} parent=11 // pred_check
          %p240 = pneg %p118
        $region14: #{tpu_custom_call.1} parent=11 // pred_check_branch
          %242 = sbr.rel (%p240) target = $region16
        $region15: #{tpu_custom_call.1} parent=11 // pred_region
          _
        $region16: #{tpu_custom_call.1} parent=11 // pred_fallthru
          _
        // Predicated region
        $region17: #{tpu_custom_call.1} parent=11 // pred_check
          %p243 = pneg %p139
        $region18: #{tpu_custom_call.1} parent=11 // pred_check_branch
          %245 = sbr.rel (%p243) target = $region20
        $region19: #{tpu_custom_call.1} parent=11 // pred_region
          _
        $region20: #{tpu_custom_call.1} parent=11 // pred_fallthru
          _
      $region12: #{tpu_custom_call.1} parent=5 // pred_fallthru
        _
      %p246 = scmp.lt.s32.totalorder %s25, 4
      // Predicated region
      $region21: #{tpu_custom_call.1} parent=5 // pred_check
        %p247 = pneg %p246
      $region22: #{tpu_custom_call.1} parent=5 // pred_check_branch
        %249 = sbr.rel (%p247) target = $region24
      $region23: #{tpu_custom_call.1} parent=5 // pred_region
        // Predicated region
        $region25: #{tpu_custom_call.1} parent=23 // pred_check
          %p250 = pneg %p61
        $region26: #{tpu_custom_call.1} parent=23 // pred_check_branch
          %252 = sbr.rel (%p250) target = $region28
        $region27: #{tpu_custom_call.1} parent=23 // pred_region
          %s253 = sand.u32 %s51, 1
          %s254 = scalar_lea.sflag [#allocation3], %s253
          %s255 = sand.u32 %s51, 1
          %s256 = smul.addr %s255, 16
          %s257 = scalar_lea.vmem [#allocation2], %s256
          %s258 = smul.u32 %s32, 2
          %s259 = sadd.s32 %s258, %s33
          %s260 = smul.u32 4, %s259
          %s262 = ssub.s32 256, 256
          %263 = vsyncadd %s254, %s262
          %s264 = smul.addr %s260, 64
          %s265 = scalar_lea.hbm %s0, %s264
          %s266 = sshll.u32 %s257, 4
          %s267 = int_to_ptr.vmem [resolvable:$true] %s266
          %272 = dma.hbm_to_vmem [thread:$0]  %s265, 256, %s267, %s254, 64, 64, 4
        $region28: #{tpu_custom_call.1} parent=23 // pred_fallthru
          _
        // Predicated region
        $region29: #{tpu_custom_call.1} parent=23 // pred_check
          %p273 = pneg %p91
        $region30: #{tpu_custom_call.1} parent=23 // pred_check_branch
          %275 = sbr.rel (%p273) target = $region32
        $region31: #{tpu_custom_call.1} parent=23 // pred_region
          %s276 = sand.u32 %s81, 1
          %s277 = scalar_lea.sflag [#allocation6], %s276
          %s278 = sand.u32 %s81, 1
          %s279 = smul.addr %s278, 8
          %s280 = scalar_lea.vmem [#allocation5], %s279
          %s281 = smul.u32 %s32, 2
          %s282 = sadd.s32 %s281, %s33
          %s284 = ssub.s32 128, 128
          %285 = vsyncadd %s277, %s284
          %s286 = smul.addr %s282, 128
          %s287 = scalar_lea.hbm %s1, %s286
          %s289 = sshll.u32 %s280, 4
          %s290 = int_to_ptr.vmem [resolvable:$true] %s289
          %292 = dma.hbm_to_vmem [thread:$0]  %s287, 128, %s290, %s277
        $region32: #{tpu_custom_call.1} parent=23 // pred_fallthru
          _
        // Predicated region
        $region33: #{tpu_custom_call.1} parent=23 // pred_check
          %p293 = pneg %p163
        $region34: #{tpu_custom_call.1} parent=23 // pred_check_branch
          %295 = sbr.rel (%p293) target = $region36
        $region35: #{tpu_custom_call.1} parent=23 // pred_region
          %s296 = smul.u32 %s32, 2
          %s297 = sadd.s32 %s296, %s33
          %s298 = smul.u32 4, %s297
          %p299 = scmp.lt.s32.totalorder %s298, 15
          %s300 = scalar_select %p299, %s298, 15
          %s301 = smul.addr %s300, 8
          %s302 = scalar_lea.vmem %s4, %s301
          %s303 = smul.u32 %s32, 2
          %s304 = sadd.s32 %s303, %s33
          %s305 = smul.u32 4, %s304
        $region36: #{tpu_custom_call.1} parent=23 // pred_fallthru
          _
      $region24: #{tpu_custom_call.1} parent=5 // pred_fallthru
        _
      %p306 = scmp.le.s32.totalorder 1, %s25
      %p307 = scmp.lt.s32.totalorder %s25, 5
      %p308 = pnand %p306, %p307
      %p309 = pneg %p308
      // Predicated region
      $region37: #{tpu_custom_call.1} parent=5 // pred_check
        _
      $region38: #{tpu_custom_call.1} parent=5 // pred_check_branch
        %311 = sbr.rel (%p308) target = $region40
      $region39: #{tpu_custom_call.1} parent=5 // pred_region
        %s312 = ssub.s32 %s25, 1
        %s313 = sand.u32 %s54, 1
        %s314 = scalar_lea.sflag [#allocation3], %s313
        %s315 = sand.u32 %s54, 1
        %s316 = smul.addr %s315, 16
        %s317 = scalar_lea.vmem [#allocation2], %s316
        // Predicated region
        $region41: #{tpu_custom_call.1} parent=39 // pred_check
          %p318 = pneg %p67
        $region42: #{tpu_custom_call.1} parent=39 // pred_check_branch
          %320 = sbr.rel (%p318) target = $region44
        $region43: #{tpu_custom_call.1} parent=39 // pred_region
          %321 = dma.done %s314, 256
        $region44: #{tpu_custom_call.1} parent=39 // pred_fallthru
          _
        %s322 = sand.u32 %s84, 1
        %s323 = scalar_lea.sflag [#allocation6], %s322
        %s324 = sand.u32 %s84, 1
        %s325 = smul.addr %s324, 8
        %s326 = scalar_lea.vmem [#allocation5], %s325
        // Predicated region
        $region45: #{tpu_custom_call.1} parent=39 // pred_check
          %p327 = pneg %p97
        $region46: #{tpu_custom_call.1} parent=39 // pred_check_branch
          %329 = sbr.rel (%p327) target = $region48
        $region47: #{tpu_custom_call.1} parent=39 // pred_region
          %330 = dma.done %s323, 128
        $region48: #{tpu_custom_call.1} parent=39 // pred_fallthru
          _
        %s331 = sand.u32 %s54, 1
        %s332 = scalar_lea.sflag [#allocation3], %s331
        %s333 = sand.u32 %s54, 1
        %s334 = smul.addr %s333, 16
        %s335 = scalar_lea.vmem [#allocation2], %s334
        %p336 = pneg %p67
        %p337 = pneg %p64
        %s338 = sand.u32 %s84, 1
        %s339 = scalar_lea.sflag [#allocation6], %s338
        %s340 = sand.u32 %s84, 1
        %s341 = smul.addr %s340, 8
        %s342 = scalar_lea.vmem [#allocation5], %s341
        %p343 = pneg %p97
        %p344 = pneg %p94
        %p345 = pneg %p118
        %p346 = pneg %p115
        %p347 = pneg %p139
        %p348 = pneg %p136
        %s349 = smul.u32 %s34, 2
        %s350 = sadd.s32 %s349, %s35
        %s351 = smul.u32 4, %s350
        %p352 = scmp.lt.s32.totalorder %s351, 15
        %s353 = scalar_select %p352, %s351, 15
        %s354 = smul.addr %s353, 8
        %s355 = scalar_lea.vmem %s4, %s354
        %p356 = pneg %p169
        %p357 = pneg %p166
        %p358 = pneg %p195
        %p359 = pneg %p192
        %s360 = sand.u32 %s182, 1
        %s361 = scalar_lea.sflag [#allocation4], %s360
        %s362 = sand.u32 %s182, 1
        %s363 = smul.addr %s362, 128
        %s364 = scalar_lea.vmem [#allocation7], %s363
        %p365 = pneg %p225
        %p366 = pneg %p222
        %s367 = sand.u32 %s212, 1
        %s368 = scalar_lea.sflag [#allocation9], %s367
        %s369 = sand.u32 %s212, 1
        %s370 = smul.addr %s369, 16
        %s371 = scalar_lea.vmem [#allocation8], %s370
        %s372 = smul.u32 %s34, 2
        %s373 = sadd.s32 %s372, %s35
        %s374 = smul.u32 4, %s373
        %s375 = smul.u32 %s34, 2
        %s376 = sadd.s32 %s375, %s35
        %s377 = smul.u32 %s34, 2
        %s378 = sadd.s32 %s377, %s35
        %s379 = smul.u32 4, %s378
        %p380 = scmp.lt.s32.totalorder %s379, 15
        %s381 = scalar_select %p380, %s379, 15
        %s382 = smul.addr %s381, 8
        %s383 = scalar_lea.vmem %s4, %s382
        %s384 = smul.u32 %s34, 2
        %s385 = sadd.s32 %s384, %s35
        %s386 = smul.u32 4, %s385
        %s387 = smul.u32 16, %s34
        %s388 = smul.u32 %s34, 2
        %s389 = sadd.s32 %s388, %s35
        %s390 = smul.u32 4, %s389
        %p392 = scmp.eq.s32.totalorder %s35, 0
        // Predicated region
        $region49: #{tpu_custom_call.1} parent=39 // pred_check
          %p393 = pneg %p392
        $region50: #{tpu_custom_call.1} parent=39 // pred_check_branch
          %395 = sbr.rel (%p393) target = $region52
        $region51: #{tpu_custom_call.1} parent=39 // pred_region
          %396 = vst [vmem:[%s364] sm:$0xff] 0.0
          %397 = vst [vmem:[%s364 + $0x8] sm:$0xff] 0.0
          %398 = vst [vmem:[%s364 + $0x10] sm:$0xff] 0.0
          %399 = vst [vmem:[%s364 + $0x18] sm:$0xff] 0.0
          %400 = vst [vmem:[%s364 + $0x20] sm:$0xff] 0.0
          %401 = vst [vmem:[%s364 + $0x28] sm:$0xff] 0.0
          %402 = vst [vmem:[%s364 + $0x30] sm:$0xff] 0.0
          %403 = vst [vmem:[%s364 + $0x38] sm:$0xff] 0.0
          %404 = vst [vmem:[%s364 + $0x40] sm:$0xff] 0.0
          %405 = vst [vmem:[%s364 + $0x48] sm:$0xff] 0.0
          %406 = vst [vmem:[%s364 + $0x50] sm:$0xff] 0.0
          %407 = vst [vmem:[%s364 + $0x58] sm:$0xff] 0.0
          %408 = vst [vmem:[%s364 + $0x60] sm:$0xff] 0.0
          %409 = vst [vmem:[%s364 + $0x68] sm:$0xff] 0.0
          %410 = vst [vmem:[%s364 + $0x70] sm:$0xff] 0.0
          %411 = vst [vmem:[%s364 + $0x78] sm:$0xff] 0.0
        $region52: #{tpu_custom_call.1} parent=39 // pred_fallthru
          _
        %v412 = vld [vmem:[%s317] sm:$0xf]
        %v413 = vld [vmem:[%s317 + $0x4] sm:$0xf]
        %v414 = vld [vmem:[%s317 + $0x8] sm:$0xf]
        %v415 = vld [vmem:[%s317 + $0xc] sm:$0xf]
        %v416 = vld [vmem:[%s2] sm:$0xff]
        %v417 = vld [vmem:[%s2 + $0x8] sm:$0xff]
        %v418 = vld [vmem:[%s2 + $0x10] sm:$0xff]
        %v419 = vld [vmem:[%s2 + $0x18] sm:$0xff]
        %v420 = vld [vmem:[%s2 + $0x20] sm:$0xff]
        %v421 = vld [vmem:[%s2 + $0x28] sm:$0xff]
        %v422 = vld [vmem:[%s2 + $0x30] sm:$0xff]
        %v423 = vld [vmem:[%s2 + $0x38] sm:$0xff]
        %v424 = vld [vmem:[%s2 + $0x40] sm:$0xff]
        %v425 = vld [vmem:[%s2 + $0x48] sm:$0xff]
        %v426 = vld [vmem:[%s2 + $0x50] sm:$0xff]
        %v427 = vld [vmem:[%s2 + $0x58] sm:$0xff]
        %v428 = vld [vmem:[%s2 + $0x60] sm:$0xff]
        %v429 = vld [vmem:[%s2 + $0x68] sm:$0xff]
        %v430 = vld [vmem:[%s2 + $0x70] sm:$0xff]
        %v431 = vld [vmem:[%s2 + $0x78] sm:$0xff]
        %v436 = vunpack.c.l.b16 %v412
        %v437 = vunpack.c.l.b16 %v413
        %v438 = vunpack.c.l.b16 %v414
        %v439 = vunpack.c.l.b16 %v415
        %v440 = vpack.c.b16 %v437, %v436
        %v441 = vpack.c.b16 %v439, %v438
        %v460 = vunpack.c.l.b16 %v416
        %v461 = vunpack.c.h.b16 %v416
        %v462 = vunpack.c.l.b16 %v417
        %v463 = vunpack.c.h.b16 %v417
        %v464 = vunpack.c.l.b16 %v418
        %v465 = vunpack.c.h.b16 %v418
        %v466 = vunpack.c.l.b16 %v419
        %v467 = vunpack.c.h.b16 %v419
        %v468 = vunpack.c.l.b16 %v420
        %v469 = vunpack.c.h.b16 %v420
        %v470 = vunpack.c.l.b16 %v421
        %v471 = vunpack.c.h.b16 %v421
        %v472 = vunpack.c.l.b16 %v422
        %v473 = vunpack.c.h.b16 %v422
        %v474 = vunpack.c.l.b16 %v423
        %v475 = vunpack.c.h.b16 %v423
        %v476 = vunpack.c.l.b16 %v424
        %v477 = vunpack.c.h.b16 %v424
        %v478 = vunpack.c.l.b16 %v425
        %v479 = vunpack.c.h.b16 %v425
        %v480 = vunpack.c.l.b16 %v426
        %v481 = vunpack.c.h.b16 %v426
        %v482 = vunpack.c.l.b16 %v427
        %v483 = vunpack.c.h.b16 %v427
        %v484 = vunpack.c.l.b16 %v428
        %v485 = vunpack.c.h.b16 %v428
        %v486 = vunpack.c.l.b16 %v429
        %v487 = vunpack.c.h.b16 %v429
        %v488 = vunpack.c.l.b16 %v430
        %v489 = vunpack.c.h.b16 %v430
        %v490 = vunpack.c.l.b16 %v431
        %v491 = vunpack.c.h.b16 %v431
        %v492 = vpack.c.b16 %v462, %v460
        %v493 = vpack.c.b16 %v463, %v461
        %v494 = vpack.c.b16 %v466, %v464
        %v495 = vpack.c.b16 %v467, %v465
        %v496 = vpack.c.b16 %v470, %v468
        %v497 = vpack.c.b16 %v471, %v469
        %v498 = vpack.c.b16 %v474, %v472
        %v499 = vpack.c.b16 %v475, %v473
        %v500 = vpack.c.b16 %v478, %v476
        %v501 = vpack.c.b16 %v479, %v477
        %v502 = vpack.c.b16 %v482, %v480
        %v503 = vpack.c.b16 %v483, %v481
        %v504 = vpack.c.b16 %v486, %v484
        %v505 = vpack.c.b16 %v487, %v485
        %v506 = vpack.c.b16 %v490, %v488
        %v507 = vpack.c.b16 %v491, %v489
        %524 = vmatprep.subr.bf16.mxu0 %v507
        %525 = vmatpush1.bf16.msra.mxu0 %v506
        %526 = vmatprep.subr.bf16.mxu0 %v505
        %527 = vmatpush1.bf16.msra.mxu0 %v504
        %528 = vmatprep.subr.bf16.mxu0 %v503
        %529 = vmatpush1.bf16.msra.mxu0 %v502
        %530 = vmatprep.subr.bf16.mxu0 %v501
        %531 = vmatpush1.bf16.msra.mxu0 %v500
        %532 = vmatprep.subr.bf16.mxu0 %v499
        %533 = vmatpush1.bf16.msra.mxu0 %v498
        %534 = vmatprep.subr.bf16.mxu0 %v497
        %535 = vmatpush1.bf16.msra.mxu0 %v496
        %536 = vmatprep.subr.bf16.mxu0 %v495
        %537 = vmatpush1.bf16.msra.mxu0 %v494
        %538 = vmatprep.subr.bf16.mxu0 %v493
        %539 = vmatpush1.bf16.msra.mxu0 %v492
        %540 = vmatprep.subr.bf16.mxu0 0
        %541 = vmatpush2.bf16.msra.mxu0 0
        %542 = vmatprep.subr.bf16.mxu0 0
        %543 = vmatpush2.bf16.msra.mxu0 0
        %544 = vmatprep.subr.bf16.mxu0 0
        %545 = vmatpush2.bf16.msra.mxu0 0
        %546 = vmatprep.subr.bf16.mxu0 0
        %547 = vmatpush2.bf16.msra.mxu0 0
        %548 = vmatprep.subr.bf16.mxu0 0
        %549 = vmatpush2.bf16.msra.mxu0 0
        %550 = vmatprep.subr.bf16.mxu0 0
        %551 = vmatpush2.bf16.msra.mxu0 0
        %552 = vmatprep.subr.bf16.mxu0 0
        %553 = vmatpush2.bf16.msra.mxu0 0
        %554 = vmatprep.subr.bf16.mxu0 0
        %555 = vmatpush2.bf16.msra.mxu0 0
        %556 = vmatprep.mubr.bf16.mxu0 0
        %557 = vmatmul.mubr.bf16.gmra.mxu0 %v440
        %v558 = vpop.f32.mrf.mxu0
        %v559 = vadd.f32 0.0, %v558
        %v560 = vpop.f32.mrf.mxu0
        %v561 = vadd.f32 0.0, %v560
        %v562 = vpop.f32.mrf.mxu0
        %v563 = vadd.f32 0.0, %v562
        %v564 = vpop.f32.mrf.mxu0
        %v565 = vadd.f32 0.0, %v564
        %566 = vmatprep.mubr.bf16.mxu0 0
        %567 = vmatmul.mubr.bf16.gmra.mxu0 %v441
        %v568 = vpop.f32.mrf.mxu0
        %v569 = vadd.f32 0.0, %v568
        %v570 = vpop.f32.mrf.mxu0
        %v571 = vadd.f32 0.0, %v570
        %v572 = vpop.f32.mrf.mxu0
        %v573 = vadd.f32 0.0, %v572
        %v574 = vpop.f32.mrf.mxu0
        %v575 = vadd.f32 0.0, %v574
        %576 = vdwg.mxu0
        %v577 = vld [vmem:[%s3] sm:$0x1]
        %v579 = vlaneseq
        %v580 = vshrl.u32 %v579, 7
        %v581 = vsub.s32 0, %v580
        %v582 = vrot.slane %v577, %v581
        %v584 = vadd.f32 %v561, %v582
        %v585 = vadd.f32 %v565, %v582
        %v586 = vadd.f32 %v571, %v582
        %v587 = vadd.f32 %v575, %v582
        %v588 = vpack.c.bf16 %v585, %v584
        %v589 = vpack.c.bf16 %v587, %v586
        %v592 = vunpack.c.l.b16 %v588
        %v593 = vunpack.c.h.b16 %v588
        %v594 = vunpack.c.l.b16 %v589
        %v595 = vunpack.c.h.b16 %v589
        %v596 = vpack.c.b16 %v592, %v592
        %v597 = vpack.c.b16 %v593, %v593
        %v598 = vpack.c.b16 %v594, %v594
        %v599 = vpack.c.b16 %v595, %v595
        %604 = vst [vmem:[%s371] sm:$0xf] %v596
        %605 = vst [vmem:[%s371 + $0x4] sm:$0xf] %v597
        %606 = vst [vmem:[%s371 + $0x8] sm:$0xf] %v598
        %607 = vst [vmem:[%s371 + $0xc] sm:$0xf] %v599
        %v608 = vld [vmem:[%s383] sm:$0xff]
        %v609 = vld [vmem:[%s383 + $0x8] sm:$0xff]
        %v610 = vld [vmem:[%s383 + $0x10] sm:$0xff]
        %v611 = vld [vmem:[%s383 + $0x18] sm:$0xff]
        %613 = vset.pattern.permute.xlu0 0
        %614 = vperm.xlu0 %613, %v608
        %v615 = vpop.permute.xlu0 %614
        %618 = vset.pattern.permute.xlu0 0
        %619 = vperm.xlu0 %618, %v609
        %v620 = vpop.permute.xlu0 %619
        %623 = vset.pattern.permute.xlu0 0
        %624 = vperm.xlu0 %623, %v610
        %v625 = vpop.permute.xlu0 %624
        %628 = vset.pattern.permute.xlu0 0
        %629 = vperm.xlu0 %628, %v611
        %v630 = vpop.permute.xlu0 %629
        %v632 = vmul.f32 %v559, %v615
        %v633 = vmul.f32 %v563, %v620
        %v634 = vmul.f32 %v569, %v625
        %v635 = vmul.f32 %v573, %v630
        %v636 = vpack.c.bf16 %v633, %v632
        %v637 = vpack.c.bf16 %v635, %v634
        %v638 = vld [vmem:[%s326] sm:$0xff]
        %v639 = vunpack.c.l.s8.bf16 %v638
        %v640 = vunpack.c.h.s8.bf16 %v638
        %v641 = vld [vmem:[%s364] sm:$0xff]
        %v642 = vld [vmem:[%s364 + $0x8] sm:$0xff]
        %v643 = vld [vmem:[%s364 + $0x10] sm:$0xff]
        %v644 = vld [vmem:[%s364 + $0x18] sm:$0xff]
        %v645 = vld [vmem:[%s364 + $0x20] sm:$0xff]
        %v646 = vld [vmem:[%s364 + $0x28] sm:$0xff]
        %v647 = vld [vmem:[%s364 + $0x30] sm:$0xff]
        %v648 = vld [vmem:[%s364 + $0x38] sm:$0xff]
        %v649 = vld [vmem:[%s364 + $0x40] sm:$0xff]
        %v650 = vld [vmem:[%s364 + $0x48] sm:$0xff]
        %v651 = vld [vmem:[%s364 + $0x50] sm:$0xff]
        %v652 = vld [vmem:[%s364 + $0x58] sm:$0xff]
        %v653 = vld [vmem:[%s364 + $0x60] sm:$0xff]
        %v654 = vld [vmem:[%s364 + $0x68] sm:$0xff]
        %v655 = vld [vmem:[%s364 + $0x70] sm:$0xff]
        %v656 = vld [vmem:[%s364 + $0x78] sm:$0xff]
        %657 = vxpose.xlu0.c.b16.start [1/8] %v639, 128
        %658 = vxpose.xlu0.c.b16.cont [2/8] %v640, 128
        %659 = vxpose.xlu0.c.b16.cont [3/8] 0, 128
        %660 = vxpose.xlu0.c.b16.cont [4/8] 0, 128
        %661 = vxpose.xlu0.c.b16.cont [5/8] 0, 128
        %662 = vxpose.xlu0.c.b16.cont [6/8] 0, 128
        %663 = vxpose.xlu0.c.b16.cont [7/8] 0, 128
        %664 = vxpose.xlu0.c.b16.end [8/8] 0, 128
        %v665 = vpop.trf.xlu0
        %v666 = vpop.trf.xlu0
        %v667 = vpop.trf.xlu0
        %v668 = vpop.trf.xlu0
        %v669 = vpop.trf.xlu0
        %v670 = vpop.trf.xlu0
        %v671 = vpop.trf.xlu0
        %v672 = vpop.trf.xlu0
        %vm673 = vcmask 261120
        %v675 = vsel %vm673, %v665, 0
        %v678 = vsel %vm673, %v666, 0
        %v681 = vsel %vm673, %v667, 0
        %v684 = vsel %vm673, %v668, 0
        %v687 = vsel %vm673, %v669, 0
        %v690 = vsel %vm673, %v670, 0
        %v693 = vsel %vm673, %v671, 0
        %v696 = vsel %vm673, %v672, 0
        %698 = vmatprep.subr.bf16.mxu0 0
        %699 = vmatpush1.bf16.msra.mxu0 0
        %700 = vmatprep.subr.bf16.mxu0 0
        %701 = vmatpush1.bf16.msra.mxu0 0
        %702 = vmatprep.subr.bf16.mxu0 0
        %703 = vmatpush1.bf16.msra.mxu0 0
        %704 = vmatprep.subr.bf16.mxu0 0
        %705 = vmatpush1.bf16.msra.mxu0 0
        %706 = vmatprep.subr.bf16.mxu0 0
        %707 = vmatpush1.bf16.msra.mxu0 0
        %708 = vmatprep.subr.bf16.mxu0 0
        %709 = vmatpush1.bf16.msra.mxu0 0
        %710 = vmatprep.subr.bf16.mxu0 0
        %711 = vmatpush1.bf16.msra.mxu0 %v637
        %712 = vmatprep.subr.bf16.mxu0 0
        %713 = vmatpush1.bf16.msra.mxu0 %v636
        %714 = vmatprep.subr.bf16.mxu0 0
        %715 = vmatpush2.bf16.msra.mxu0 0
        %716 = vmatprep.subr.bf16.mxu0 0
        %717 = vmatpush2.bf16.msra.mxu0 0
        %718 = vmatprep.subr.bf16.mxu0 0
        %719 = vmatpush2.bf16.msra.mxu0 0
        %720 = vmatprep.subr.bf16.mxu0 0
        %721 = vmatpush2.bf16.msra.mxu0 0
        %722 = vmatprep.subr.bf16.mxu0 0
        %723 = vmatpush2.bf16.msra.mxu0 0
        %724 = vmatprep.subr.bf16.mxu0 0
        %725 = vmatpush2.bf16.msra.mxu0 0
        %726 = vmatprep.subr.bf16.mxu0 0
        %727 = vmatpush2.bf16.msra.mxu0 0
        %728 = vmatprep.subr.bf16.mxu0 0
        %729 = vmatpush2.bf16.msra.mxu0 0
        %730 = vmatprep.mubr.bf16.mxu0 0
        %731 = vmatmul.mubr.bf16.gmra.mxu0 %v675
        %v732 = vpop.f32.mrf.mxu0
        %v733 = vadd.f32 0.0, %v732
        %v734 = vpop.f32.mrf.mxu0
        %v735 = vpop.f32.mrf.mxu0
        %v736 = vadd.f32 0.0, %v735
        %v737 = vpop.f32.mrf.mxu0
        %738 = vmatprep.mubr.bf16.mxu0 0
        %739 = vmatmul.mubr.bf16.gmra.mxu0 %v678
        %v740 = vpop.f32.mrf.mxu0
        %v741 = vadd.f32 0.0, %v740
        %v742 = vpop.f32.mrf.mxu0
        %v743 = vpop.f32.mrf.mxu0
        %v744 = vadd.f32 0.0, %v743
        %v745 = vpop.f32.mrf.mxu0
        %746 = vmatprep.mubr.bf16.mxu0 0
        %747 = vmatmul.mubr.bf16.gmra.mxu0 %v681
        %v748 = vpop.f32.mrf.mxu0
        %v749 = vadd.f32 0.0, %v748
        %v750 = vpop.f32.mrf.mxu0
        %v751 = vpop.f32.mrf.mxu0
        %v752 = vadd.f32 0.0, %v751
        %v753 = vpop.f32.mrf.mxu0
        %754 = vmatprep.mubr.bf16.mxu0 0
        %755 = vmatmul.mubr.bf16.gmra.mxu0 %v684
        %v756 = vpop.f32.mrf.mxu0
        %v757 = vadd.f32 0.0, %v756
        %v758 = vpop.f32.mrf.mxu0
        %v759 = vpop.f32.mrf.mxu0
        %v760 = vadd.f32 0.0, %v759
        %v761 = vpop.f32.mrf.mxu0
        %762 = vmatprep.mubr.bf16.mxu0 0
        %763 = vmatmul.mubr.bf16.gmra.mxu0 %v687
        %v764 = vpop.f32.mrf.mxu0
        %v765 = vadd.f32 0.0, %v764
        %v766 = vpop.f32.mrf.mxu0
        %v767 = vpop.f32.mrf.mxu0
        %v768 = vadd.f32 0.0, %v767
        %v769 = vpop.f32.mrf.mxu0
        %770 = vmatprep.mubr.bf16.mxu0 0
        %771 = vmatmul.mubr.bf16.gmra.mxu0 %v690
        %v772 = vpop.f32.mrf.mxu0
        %v773 = vadd.f32 0.0, %v772
        %v774 = vpop.f32.mrf.mxu0
        %v775 = vpop.f32.mrf.mxu0
        %v776 = vadd.f32 0.0, %v775
        %v777 = vpop.f32.mrf.mxu0
        %778 = vmatprep.mubr.bf16.mxu0 0
        %779 = vmatmul.mubr.bf16.gmra.mxu0 %v693
        %v780 = vpop.f32.mrf.mxu0
        %v781 = vadd.f32 0.0, %v780
        %v782 = vpop.f32.mrf.mxu0
        %v783 = vpop.f32.mrf.mxu0
        %v784 = vadd.f32 0.0, %v783
        %v785 = vpop.f32.mrf.mxu0
        %786 = vmatprep.mubr.bf16.mxu0 0
        %787 = vmatmul.mubr.bf16.gmra.mxu0 %v696
        %v788 = vpop.f32.mrf.mxu0
        %v789 = vadd.f32 0.0, %v788
        %v790 = vpop.f32.mrf.mxu0
        %v791 = vpop.f32.mrf.mxu0
        %v792 = vadd.f32 0.0, %v791
        %v793 = vpop.f32.mrf.mxu0
        %794 = vdwg.mxu0
        %v795 = vadd.f32 %v641, %v733
        %v796 = vadd.f32 %v642, %v736
        %v797 = vadd.f32 %v643, %v741
        %v798 = vadd.f32 %v644, %v744
        %v799 = vadd.f32 %v645, %v749
        %v800 = vadd.f32 %v646, %v752
        %v801 = vadd.f32 %v647, %v757
        %v802 = vadd.f32 %v648, %v760
        %v803 = vadd.f32 %v649, %v765
        %v804 = vadd.f32 %v650, %v768
        %v805 = vadd.f32 %v651, %v773
        %v806 = vadd.f32 %v652, %v776
        %v807 = vadd.f32 %v653, %v781
        %v808 = vadd.f32 %v654, %v784
        %v809 = vadd.f32 %v655, %v789
        %v810 = vadd.f32 %v656, %v792
        %811 = vst [vmem:[%s364] sm:$0xff] %v795
        %812 = vst [vmem:[%s364 + $0x8] sm:$0xff] %v796
        %813 = vst [vmem:[%s364 + $0x10] sm:$0xff] %v797
        %814 = vst [vmem:[%s364 + $0x18] sm:$0xff] %v798
        %815 = vst [vmem:[%s364 + $0x20] sm:$0xff] %v799
        %816 = vst [vmem:[%s364 + $0x28] sm:$0xff] %v800
        %817 = vst [vmem:[%s364 + $0x30] sm:$0xff] %v801
        %818 = vst [vmem:[%s364 + $0x38] sm:$0xff] %v802
        %819 = vst [vmem:[%s364 + $0x40] sm:$0xff] %v803
        %820 = vst [vmem:[%s364 + $0x48] sm:$0xff] %v804
        %821 = vst [vmem:[%s364 + $0x50] sm:$0xff] %v805
        %822 = vst [vmem:[%s364 + $0x58] sm:$0xff] %v806
        %823 = vst [vmem:[%s364 + $0x60] sm:$0xff] %v807
        %824 = vst [vmem:[%s364 + $0x68] sm:$0xff] %v808
        %825 = vst [vmem:[%s364 + $0x70] sm:$0xff] %v809
        %826 = vst [vmem:[%s364 + $0x78] sm:$0xff] %v810
        %s827 = sand.u32 %s182, 1
        %s828 = scalar_lea.sflag [#allocation4], %s827
        %s829 = sand.u32 %s182, 1
        %s830 = smul.addr %s829, 128
        %s831 = scalar_lea.vmem [#allocation7], %s830
        %s832 = sand.u32 %s212, 1
        %s833 = scalar_lea.sflag [#allocation9], %s832
        %s834 = sand.u32 %s212, 1
        %s835 = smul.addr %s834, 16
        %s836 = scalar_lea.vmem [#allocation8], %s835
        // Predicated region
        $region53: #{tpu_custom_call.1} parent=39 // pred_check
          %p837 = pneg %p192
        $region54: #{tpu_custom_call.1} parent=39 // pred_check_branch
          %839 = sbr.rel (%p837) target = $region56
        $region55: #{tpu_custom_call.1} parent=39 // pred_region
          %s840 = smul.u32 16, %s34
          %s842 = ssub.s32 2048, 2048
          %843 = vsyncadd %s828, %s842
          %s844 = smul.addr %s840, 128
          %s845 = scalar_lea.hbm %s5, %s844
          %s846 = sshll.u32 %s831, 4
          %s847 = int_to_ptr.vmem [resolvable:$true] %s846
          %852 = dma.vmem_to_hbm [thread:$0]  %s847, 2048, %s845, %s828, 128, 128, 8
        $region56: #{tpu_custom_call.1} parent=39 // pred_fallthru
          _
        // Predicated region
        $region57: #{tpu_custom_call.1} parent=39 // pred_check
          %p853 = pneg %p222
        $region58: #{tpu_custom_call.1} parent=39 // pred_check_branch
          %855 = sbr.rel (%p853) target = $region60
        $region59: #{tpu_custom_call.1} parent=39 // pred_region
          %s856 = smul.u32 %s34, 2
          %s857 = sadd.s32 %s856, %s35
          %s858 = smul.u32 4, %s857
          %s860 = ssub.s32 256, 256
          %861 = vsyncadd %s833, %s860
          %s862 = smul.addr %s858, 64
          %s863 = scalar_lea.hbm %s6, %s862
          %s864 = sshll.u32 %s836, 4
          %s865 = int_to_ptr.vmem [resolvable:$true] %s864
          %870 = dma.vmem_to_hbm [thread:$0]  %s865, 256, %s863, %s833, 64, 64, 4
        $region60: #{tpu_custom_call.1} parent=39 // pred_fallthru
          _
      $region40: #{tpu_custom_call.1} parent=5 // pred_fallthru
        _
      %p871 = scmp.le.s32.totalorder 2, %s25
      // Predicated region
      $region61: #{tpu_custom_call.1} parent=5 // pred_check
        %p872 = pneg %p871
      $region62: #{tpu_custom_call.1} parent=5 // pred_check_branch
        %874 = sbr.rel (%p872) target = $region64
      $region63: #{tpu_custom_call.1} parent=5 // pred_region
        %s875 = ssub.s32 %s25, 2
        // Predicated region
        $region65: #{tpu_custom_call.1} parent=63 // pred_check
          %p876 = pneg %p198
        $region66: #{tpu_custom_call.1} parent=63 // pred_check_branch
          %878 = sbr.rel (%p876) target = $region68
        $region67: #{tpu_custom_call.1} parent=63 // pred_region
          %s879 = sand.u32 %s183, 1
          %s880 = scalar_lea.sflag [#allocation4], %s879
          %s881 = sand.u32 %s183, 1
          %s882 = smul.addr %s881, 128
          %s883 = scalar_lea.vmem [#allocation7], %s882
          %884 = dma.done %s880, 2048
        $region68: #{tpu_custom_call.1} parent=63 // pred_fallthru
          _
        // Predicated region
        $region69: #{tpu_custom_call.1} parent=63 // pred_check
          %p885 = pneg %p228
        $region70: #{tpu_custom_call.1} parent=63 // pred_check_branch
          %887 = sbr.rel (%p885) target = $region72
        $region71: #{tpu_custom_call.1} parent=63 // pred_region
          %s888 = sand.u32 %s213, 1
          %s889 = scalar_lea.sflag [#allocation9], %s888
          %s890 = sand.u32 %s213, 1
          %s891 = smul.addr %s890, 16
          %s892 = scalar_lea.vmem [#allocation8], %s891
          %893 = dma.done %s889, 256
        $region72: #{tpu_custom_call.1} parent=63 // pred_fallthru
          _
      $region64: #{tpu_custom_call.1} parent=5 // pred_fallthru
        _
    $region6: #{tpu_custom_call.1} parent=1 // loop_footer
      %s29 = sadd.s32 1, %s25
    $region7: #{tpu_custom_call.1} parent=1 // loop_footer_branch
      %24 = sbr.rel target = $region3
    $region8: #{tpu_custom_call.1} parent=1 // loop_exit
      _
    %894 = vsyncpa [#allocation3], 1
    %s895 = scalar_lea.sflag [#allocation3], 1
    %896 = vsyncpa %s895, 1
    %897 = vsyncpa [#allocation6], 1
    %s898 = scalar_lea.sflag [#allocation6], 1
    %899 = vsyncpa %s898, 1
    %900 = vsyncpa [#allocation4], 1
    %s901 = scalar_lea.sflag [#allocation4], 1
    %902 = vsyncpa %s901, 1
    %903 = vsyncpa [#allocation9], 1
    %s904 = scalar_lea.sflag [#allocation9], 1
    %905 = vsyncpa %s904, 1

</llo_original>
